<compile_context>
chip_gen: v7x
topology: tpu7x:2x2x1
jax: 0.10.0
libtpu: 0.0.40
codegen_flags: <defaults>
</compile_context>

<pallas_src>
import functools

import jax
import jax.numpy as jnp
from jax import lax
from jax.experimental import pallas as pl
from jax.experimental.pallas import tpu as pltpu


def _dwconv_kernel(x_ref, dw_ref, pw_ref, bf_ref, rc_ref, o_ref, *, H, W, use_mxu):
    # x_ref : (BN, Cin, HW)   flattened-spatial input block in VMEM
    # dw_ref: (9, Cin, 1)     depthwise taps, tap t = ky*3 + kx, sublane-oriented
    # pw_ref: (Cout, Cin)     [MXU path]  or  (Cout, Cin, 1) [VPU path]
    # bf_ref: (Cout, 1)       fused bias (pw @ b_dw + b_pw)
    # rc_ref: (2, HW) int32   row / col index of each flattened position
    # o_ref : (BN, Cout, HW)  output block in VMEM
    bn, cin, hw = x_ref.shape
    cout = o_ref.shape[1]

    x = x_ref[...].astype(jnp.float32)                       # (BN, Cin, HW)

    row = rc_ref[0]                                          # (HW,) int32
    col = rc_ref[1]                                          # (HW,) int32
    # Border-validity conditions, shared by every channel and every batch image.
    row_ok = {-1: row >= 1, 0: None, 1: row <= H - 2}
    col_ok = {-1: col >= 1, 0: None, 1: col <= W - 2}

    # ---- depthwise 3x3: 8 shared lane-rolls (XLU) + masked FMAs over all channels ----
    acc = None
    for ky in range(3):
        for kx in range(3):
            dy, dx = ky - 1, kx - 1
            d = dy * W + dx                                  # flattened neighbour offset
            shift = (-d) % hw
            shifted = x if shift == 0 else pltpu.roll(x, shift, axis=2)
            conds = [c for c in (row_ok[dy], col_ok[dx]) if c is not None]
            if conds:
                m = conds[0] if len(conds) == 1 else jnp.logical_and(conds[0], conds[1])
                shifted = jnp.where(m, shifted, 0.0)         # zero wrapped/out-of-bounds taps
            w_t = dw_ref[ky * 3 + kx]                        # (Cin, 1) per-channel tap weight
            contrib = shifted * w_t
            acc = contrib if acc is None else acc + contrib  # (BN, Cin, HW) f32

    # ---- pointwise 1x1 ----
    if use_mxu:
        # (Cout, Cin) @ (Cin, HW) per image on the MXU.
        pw = pw_ref[...]
        bias = bf_ref[...]                                   # (Cout, 1)
        for b in range(bn):
            y = jnp.dot(pw, acc[b], preferred_element_type=jnp.float32)   # (Cout, HW)
            o_ref[b] = (y + bias).astype(o_ref.dtype)
    else:
        # Tiny channel counts: VPU broadcast-multiply + sublane reduce per output channel.
        for co in range(cout):
            w = pw_ref[co]                                   # (Cin, 1)
            y = jnp.sum(acc * w, axis=1)                     # (BN, HW)
            o_ref[:, co, :] = (y + bf_ref[co, :]).astype(o_ref.dtype)


def dwconv_nobr(x_nchw, w_dw, b_dw, w_pw, b_pw):
    """Forward pass of DWConvNobr (NCHW in, NCHW out, matching the PyTorch module).

    x_nchw : (N, Cin, H, W)
    w_dw   : (Cin, 1, 3, 3)    depthwise conv weight
    b_dw   : (Cin,)
    w_pw   : (Cout, Cin, 1, 1) pointwise conv weight
    b_pw   : (Cout,)
    returns (N, Cout, H, W)
    """
    N, Cin, H, W = x_nchw.shape
    Cout = w_pw.shape[0]
    HW = H * W
    assert H >= 1 and W >= 1, "degenerate spatial dims"
    assert w_dw.shape[0] == Cin and w_pw.shape[1] == Cin

    # Lane-dense layout: free metadata reshape of contiguous NCHW.
    x_flat = x_nchw.reshape(N, Cin, HW)

    # Tap-major depthwise weights (9, Cin, 1): [ky*3+kx, c, 0] = w_dw[c, 0, ky, kx].
    dw_taps = jnp.transpose(w_dw.astype(jnp.float32)[:, 0, :, :], (1, 2, 0)).reshape(9, Cin, 1)
    pw_mat = w_pw[:, :, 0, 0].astype(jnp.float32)            # (Cout, Cin)
    # Fold depthwise bias:  pw @ (y + b_dw) + b_pw == pw @ y + (pw @ b_dw + b_pw)
    b_fused = (pw_mat @ b_dw.astype(jnp.float32) + b_pw.astype(jnp.float32)).reshape(Cout, 1)

    # Row / col index of each flattened spatial position (for in-kernel border masks).
    rr, cc = jnp.meshgrid(jnp.arange(H, dtype=jnp.int32),
                          jnp.arange(W, dtype=jnp.int32), indexing="ij")
    rc = jnp.stack([rr.reshape(HW), cc.reshape(HW)], axis=0)  # (2, HW)

    # Batch blocking: collapse tiny problems into one grid step (avoid pure per-step
    # launch overhead), otherwise one image per parallel grid step.
    tiny = (N * (Cin + Cout) * HW * 4 <= (512 << 10)) and (N <= 8)
    BN = N if tiny else 1
    nb = N // BN

    # Shape-conditional MXU use for the 1x1 conv (crossover is lower on v5e; 16 is safe).
    use_mxu = (Cin >= 16) and (Cout >= 16)
    if use_mxu:
        pw_arr = pw_mat                                       # (Cout, Cin)
        pw_spec = pl.BlockSpec((Cout, Cin), lambda b: (0, 0))
    else:
        pw_arr = pw_mat.reshape(Cout, Cin, 1)                 # sublane-oriented columns
        pw_spec = pl.BlockSpec((Cout, Cin, 1), lambda b: (0, 0, 0))

    # Explicit VMEM budget hint (double-buffered in/out blocks + f32 working set),
    # kept under the v7x 64 MiB physical ceiling.
    block_bytes = 4 * BN * (Cin + Cout) * HW
    vmem_limit = int(min(64 << 20, max(32 << 20, 6 * block_bytes)))

    kernel = functools.partial(_dwconv_kernel, H=H, W=W, use_mxu=use_mxu)

    out_flat = pl.pallas_call(
        kernel,
        out_shape=jax.ShapeDtypeStruct((N, Cout, HW), x_nchw.dtype),
        grid_spec=pltpu.PrefetchScalarGridSpec(
            num_scalar_prefetch=0,
            grid=(nb,),
            in_specs=[
                pl.BlockSpec((BN, Cin, HW), lambda b: (b, 0, 0)),
                pl.BlockSpec((9, Cin, 1), lambda b: (0, 0, 0)),
                pw_spec,
                pl.BlockSpec((Cout, 1), lambda b: (0, 0)),
                pl.BlockSpec((2, HW), lambda b: (0, 0)),
            ],
            out_specs=pl.BlockSpec((BN, Cout, HW), lambda b: (b, 0, 0)),
        ),
        compiler_params=pltpu.CompilerParams(
            dimension_semantics=("parallel",),
            vmem_limit_bytes=vmem_limit),
    )(x_flat, dw_taps, pw_arr, b_fused, rc)

    return out_flat.reshape(N, Cout, H, W)


def _reference(x_nchw, w_dw, b_dw, w_pw, b_pw):
    """Pure-JAX reference using lax.conv_general_dilated (NCHW, like PyTorch)."""
    Cin = x_nchw.shape[1]
    dn = lax.conv_dimension_numbers(x_nchw.shape, w_dw.shape, ("NCHW", "OIHW", "NCHW"))
    y = lax.conv_general_dilated(x_nchw, w_dw, window_strides=(1, 1),
                                 padding=((1, 1), (1, 1)),
                                 dimension_numbers=dn, feature_group_count=Cin)
    y = y + b_dw.reshape(1, -1, 1, 1)
    dn2 = lax.conv_dimension_numbers(y.shape, w_pw.shape, ("NCHW", "OIHW", "NCHW"))
    z = lax.conv_general_dilated(y, w_pw, window_strides=(1, 1), padding=((0, 0), (0, 0)),
                                 dimension_numbers=dn2)
    return z + b_pw.reshape(1, -1, 1, 1)


if __name__ == "__main__":
    key = jax.random.PRNGKey(0)

    def _check(N, Cin, Cout, H, W, k):
        k_x, k_dw, k_db, k_pw, k_pb = jax.random.split(k, 5)
        x = jax.random.normal(k_x, (N, Cin, H, W), jnp.float32)
        w_dw = jax.random.normal(k_dw, (Cin, 1, 3, 3), jnp.float32) * 0.1
        b_dw = jax.random.normal(k_db, (Cin,), jnp.float32) * 0.1
        w_pw = jax.random.normal(k_pw, (Cout, Cin, 1, 1), jnp.float32) * 0.1
        b_pw = jax.random.normal(k_pb, (Cout,), jnp.float32) * 0.1
        out = jax.block_until_ready(dwconv_nobr(x, w_dw, b_dw, w_pw, b_pw))
        ref = _reference(x, w_dw, b_dw, w_pw, b_pw)
        assert out.shape == (N, Cout, H, W)
        assert jnp.allclose(out, ref, atol=1e-4, rtol=1e-4), "mismatch vs reference"

    k1, k2 = jax.random.split(key)
    _check(2, 4, 8, 16, 16, k1)     # tiny channel counts -> VPU pointwise path
    _check(1, 32, 64, 16, 16, k2)   # larger channel counts -> MXU pointwise path
    print("KERNEL_OK")
</pallas_src>

<mosaic_0001>
module attributes {stable_mosaic.version = 11 : i64} {
  func.func @_dwconv_kernel(%arg0: i32, %arg1: memref<2x4x256xf32, #tpu.memory_space<vmem>>, %arg2: memref<9x4x1xf32, #tpu.memory_space<vmem>>, %arg3: memref<8x4x1xf32, #tpu.memory_space<vmem>>, %arg4: memref<8x1xf32, #tpu.memory_space<vmem>>, %arg5: memref<2x256xi32, #tpu.memory_space<vmem>>, %arg6: memref<2x8x256xf32, #tpu.memory_space<vmem>>) attributes {dimension_semantics = [#tpu.dimension_semantics<parallel>], iteration_bounds = array<i64: 1>, scalar_prefetch = 0 : i64, scratch_operands = 0 : i64, tpu.core_type = #tpu.core_type<tc>, window_params = [{transform_indices = @transform_0, window_bounds = array<i64: 2, 4, 256>}, {pipeline_mode = #tpu.pipeline_mode<synchronous>, transform_indices = @transform_1, window_bounds = array<i64: 9, 4, 1>}, {pipeline_mode = #tpu.pipeline_mode<synchronous>, transform_indices = @transform_2, window_bounds = array<i64: 8, 4, 1>}, {pipeline_mode = #tpu.pipeline_mode<synchronous>, transform_indices = @transform_3, window_bounds = array<i64: 8, 1>}, {pipeline_mode = #tpu.pipeline_mode<synchronous>, transform_indices = @transform_4, window_bounds = array<i64: 2, 256>}, {transform_indices = @transform_5, window_bounds = array<i64: 2, 8, 256>}]} {
    %c0 = arith.constant 0 : index
    %c0_0 = arith.constant 0 : index
    %c0_1 = arith.constant 0 : index
    %0 = vector.load %arg1[%c0, %c0_0, %c0_1] : memref<2x4x256xf32, #tpu.memory_space<vmem>>, vector<2x4x256xf32>
    %c0_2 = arith.constant 0 : index
    %c0_3 = arith.constant 0 : index
    %1 = vector.load %arg5[%c0_2, %c0_3] : memref<2x256xi32, #tpu.memory_space<vmem>>, vector<1x256xi32>
    %2 = vector.shape_cast %1 : vector<1x256xi32> to vector<256xi32>
    %c1 = arith.constant 1 : index
    %c0_4 = arith.constant 0 : index
    %3 = vector.load %arg5[%c1, %c0_4] : memref<2x256xi32, #tpu.memory_space<vmem>>, vector<1x256xi32>
    %4 = vector.shape_cast %3 : vector<1x256xi32> to vector<256xi32>
    %c1_i32 = arith.constant 1 : i32
    %5 = vector.broadcast %c1_i32 : i32 to vector<256xi32>
    %6 = arith.cmpi sge, %2, %5 : vector<256xi32>
    %c14_i32 = arith.constant 14 : i32
    %7 = vector.broadcast %c14_i32 : i32 to vector<256xi32>
    %8 = arith.cmpi sle, %2, %7 : vector<256xi32>
    %c1_i32_5 = arith.constant 1 : i32
    %9 = vector.broadcast %c1_i32_5 : i32 to vector<256xi32>
    %10 = arith.cmpi sge, %4, %9 : vector<256xi32>
    %c14_i32_6 = arith.constant 14 : i32
    %11 = vector.broadcast %c14_i32_6 : i32 to vector<256xi32>
    %12 = arith.cmpi sle, %4, %11 : vector<256xi32>
    %c17_i32 = arith.constant 17 : i32
    %13 = tpu.dynamic_rotate %0 by %c17_i32 dim 2 : vector<2x4x256xf32>, i32 -> vector<2x4x256xf32>
    %14 = arith.andi %6, %10 : vector<256xi1>
    %cst = arith.constant 0.000000e+00 : f32
    %15 = vector.shape_cast %14 : vector<256xi1> to vector<1x1x256xi1>
    %16 = vector.broadcast %15 : vector<1x1x256xi1> to vector<2x4x256xi1>
    %17 = vector.broadcast %cst : f32 to vector<2x4x256xf32>
    %18 = arith.select %16, %13, %17 : vector<2x4x256xi1>, vector<2x4x256xf32>
    %c0_7 = arith.constant 0 : index
    %c0_8 = arith.constant 0 : index
    %c0_9 = arith.constant 0 : index
    %19 = vector.load %arg2[%c0_7, %c0_8, %c0_9] : memref<9x4x1xf32, #tpu.memory_space<vmem>>, vector<1x4x1xf32>
    %20 = vector.shape_cast %19 : vector<1x4x1xf32> to vector<4x1xf32>
    %21 = vector.shape_cast %20 : vector<4x1xf32> to vector<1x4x1xf32>
    %22 = vector.broadcast %21 : vector<1x4x1xf32> to vector<2x4x256xf32>
    %23 = arith.mulf %18, %22 : vector<2x4x256xf32>
    %c16_i32 = arith.constant 16 : i32
    %24 = tpu.dynamic_rotate %0 by %c16_i32 dim 2 : vector<2x4x256xf32>, i32 -> vector<2x4x256xf32>
    %cst_10 = arith.constant 0.000000e+00 : f32
    %25 = vector.shape_cast %6 : vector<256xi1> to vector<1x1x256xi1>
    %26 = vector.broadcast %25 : vector<1x1x256xi1> to vector<2x4x256xi1>
    %27 = vector.broadcast %cst_10 : f32 to vector<2x4x256xf32>
    %28 = arith.select %26, %24, %27 : vector<2x4x256xi1>, vector<2x4x256xf32>
    %c1_11 = arith.constant 1 : index
    %c0_12 = arith.constant 0 : index
    %c0_13 = arith.constant 0 : index
    %29 = vector.load %arg2[%c1_11, %c0_12, %c0_13] : memref<9x4x1xf32, #tpu.memory_space<vmem>>, vector<1x4x1xf32>
    %30 = vector.shape_cast %29 : vector<1x4x1xf32> to vector<4x1xf32>
    %31 = vector.shape_cast %30 : vector<4x1xf32> to vector<1x4x1xf32>
    %32 = vector.broadcast %31 : vector<1x4x1xf32> to vector<2x4x256xf32>
    %33 = arith.mulf %28, %32 : vector<2x4x256xf32>
    %34 = arith.addf %23, %33 : vector<2x4x256xf32>
    %c15_i32 = arith.constant 15 : i32
    %35 = tpu.dynamic_rotate %0 by %c15_i32 dim 2 : vector<2x4x256xf32>, i32 -> vector<2x4x256xf32>
    %36 = arith.andi %6, %12 : vector<256xi1>
    %cst_14 = arith.constant 0.000000e+00 : f32
    %37 = vector.shape_cast %36 : vector<256xi1> to vector<1x1x256xi1>
    %38 = vector.broadcast %37 : vector<1x1x256xi1> to vector<2x4x256xi1>
    %39 = vector.broadcast %cst_14 : f32 to vector<2x4x256xf32>
    %40 = arith.select %38, %35, %39 : vector<2x4x256xi1>, vector<2x4x256xf32>
    %c2 = arith.constant 2 : index
    %c0_15 = arith.constant 0 : index
    %c0_16 = arith.constant 0 : index
    %41 = vector.load %arg2[%c2, %c0_15, %c0_16] : memref<9x4x1xf32, #tpu.memory_space<vmem>>, vector<1x4x1xf32>
    %42 = vector.shape_cast %41 : vector<1x4x1xf32> to vector<4x1xf32>
    %43 = vector.shape_cast %42 : vector<4x1xf32> to vector<1x4x1xf32>
    %44 = vector.broadcast %43 : vector<1x4x1xf32> to vector<2x4x256xf32>
    %45 = arith.mulf %40, %44 : vector<2x4x256xf32>
    %46 = arith.addf %34, %45 : vector<2x4x256xf32>
    %c1_i32_17 = arith.constant 1 : i32
    %47 = tpu.dynamic_rotate %0 by %c1_i32_17 dim 2 : vector<2x4x256xf32>, i32 -> vector<2x4x256xf32>
    %cst_18 = arith.constant 0.000000e+00 : f32
    %48 = vector.shape_cast %10 : vector<256xi1> to vector<1x1x256xi1>
    %49 = vector.broadcast %48 : vector<1x1x256xi1> to vector<2x4x256xi1>
    %50 = vector.broadcast %cst_18 : f32 to vector<2x4x256xf32>
    %51 = arith.select %49, %47, %50 : vector<2x4x256xi1>, vector<2x4x256xf32>
    %c3 = arith.constant 3 : index
    %c0_19 = arith.constant 0 : index
    %c0_20 = arith.constant 0 : index
    %52 = vector.load %arg2[%c3, %c0_19, %c0_20] : memref<9x4x1xf32, #tpu.memory_space<vmem>>, vector<1x4x1xf32>
    %53 = vector.shape_cast %52 : vector<1x4x1xf32> to vector<4x1xf32>
    %54 = vector.shape_cast %53 : vector<4x1xf32> to vector<1x4x1xf32>
    %55 = vector.broadcast %54 : vector<1x4x1xf32> to vector<2x4x256xf32>
    %56 = arith.mulf %51, %55 : vector<2x4x256xf32>
    %57 = arith.addf %46, %56 : vector<2x4x256xf32>
    %c4 = arith.constant 4 : index
    %c0_21 = arith.constant 0 : index
    %c0_22 = arith.constant 0 : index
    %58 = vector.load %arg2[%c4, %c0_21, %c0_22] : memref<9x4x1xf32, #tpu.memory_space<vmem>>, vector<1x4x1xf32>
    %59 = vector.shape_cast %58 : vector<1x4x1xf32> to vector<4x1xf32>
    %60 = vector.shape_cast %59 : vector<4x1xf32> to vector<1x4x1xf32>
    %61 = vector.broadcast %60 : vector<1x4x1xf32> to vector<2x4x256xf32>
    %62 = arith.mulf %0, %61 : vector<2x4x256xf32>
    %63 = arith.addf %57, %62 : vector<2x4x256xf32>
    %c255_i32 = arith.constant 255 : i32
    %64 = tpu.dynamic_rotate %0 by %c255_i32 dim 2 : vector<2x4x256xf32>, i32 -> vector<2x4x256xf32>
    %cst_23 = arith.constant 0.000000e+00 : f32
    %65 = vector.shape_cast %12 : vector<256xi1> to vector<1x1x256xi1>
    %66 = vector.broadcast %65 : vector<1x1x256xi1> to vector<2x4x256xi1>
    %67 = vector.broadcast %cst_23 : f32 to vector<2x4x256xf32>
    %68 = arith.select %66, %64, %67 : vector<2x4x256xi1>, vector<2x4x256xf32>
    %c5 = arith.constant 5 : index
    %c0_24 = arith.constant 0 : index
    %c0_25 = arith.constant 0 : index
    %69 = vector.load %arg2[%c5, %c0_24, %c0_25] : memref<9x4x1xf32, #tpu.memory_space<vmem>>, vector<1x4x1xf32>
    %70 = vector.shape_cast %69 : vector<1x4x1xf32> to vector<4x1xf32>
    %71 = vector.shape_cast %70 : vector<4x1xf32> to vector<1x4x1xf32>
    %72 = vector.broadcast %71 : vector<1x4x1xf32> to vector<2x4x256xf32>
    %73 = arith.mulf %68, %72 : vector<2x4x256xf32>
    %74 = arith.addf %63, %73 : vector<2x4x256xf32>
    %c241_i32 = arith.constant 241 : i32
    %75 = tpu.dynamic_rotate %0 by %c241_i32 dim 2 : vector<2x4x256xf32>, i32 -> vector<2x4x256xf32>
    %76 = arith.andi %8, %10 : vector<256xi1>
    %cst_26 = arith.constant 0.000000e+00 : f32
    %77 = vector.shape_cast %76 : vector<256xi1> to vector<1x1x256xi1>
    %78 = vector.broadcast %77 : vector<1x1x256xi1> to vector<2x4x256xi1>
    %79 = vector.broadcast %cst_26 : f32 to vector<2x4x256xf32>
    %80 = arith.select %78, %75, %79 : vector<2x4x256xi1>, vector<2x4x256xf32>
    %c6 = arith.constant 6 : index
    %c0_27 = arith.constant 0 : index
    %c0_28 = arith.constant 0 : index
    %81 = vector.load %arg2[%c6, %c0_27, %c0_28] : memref<9x4x1xf32, #tpu.memory_space<vmem>>, vector<1x4x1xf32>
    %82 = vector.shape_cast %81 : vector<1x4x1xf32> to vector<4x1xf32>
    %83 = vector.shape_cast %82 : vector<4x1xf32> to vector<1x4x1xf32>
    %84 = vector.broadcast %83 : vector<1x4x1xf32> to vector<2x4x256xf32>
    %85 = arith.mulf %80, %84 : vector<2x4x256xf32>
    %86 = arith.addf %74, %85 : vector<2x4x256xf32>
    %c240_i32 = arith.constant 240 : i32
    %87 = tpu.dynamic_rotate %0 by %c240_i32 dim 2 : vector<2x4x256xf32>, i32 -> vector<2x4x256xf32>
    %cst_29 = arith.constant 0.000000e+00 : f32
    %88 = vector.shape_cast %8 : vector<256xi1> to vector<1x1x256xi1>
    %89 = vector.broadcast %88 : vector<1x1x256xi1> to vector<2x4x256xi1>
    %90 = vector.broadcast %cst_29 : f32 to vector<2x4x256xf32>
    %91 = arith.select %89, %87, %90 : vector<2x4x256xi1>, vector<2x4x256xf32>
    %c7 = arith.constant 7 : index
    %c0_30 = arith.constant 0 : index
    %c0_31 = arith.constant 0 : index
    %92 = vector.load %arg2[%c7, %c0_30, %c0_31] : memref<9x4x1xf32, #tpu.memory_space<vmem>>, vector<1x4x1xf32>
    %93 = vector.shape_cast %92 : vector<1x4x1xf32> to vector<4x1xf32>
    %94 = vector.shape_cast %93 : vector<4x1xf32> to vector<1x4x1xf32>
    %95 = vector.broadcast %94 : vector<1x4x1xf32> to vector<2x4x256xf32>
    %96 = arith.mulf %91, %95 : vector<2x4x256xf32>
    %97 = arith.addf %86, %96 : vector<2x4x256xf32>
    %c239_i32 = arith.constant 239 : i32
    %98 = tpu.dynamic_rotate %0 by %c239_i32 dim 2 : vector<2x4x256xf32>, i32 -> vector<2x4x256xf32>
    %99 = arith.andi %8, %12 : vector<256xi1>
    %cst_32 = arith.constant 0.000000e+00 : f32
    %100 = vector.shape_cast %99 : vector<256xi1> to vector<1x1x256xi1>
    %101 = vector.broadcast %100 : vector<1x1x256xi1> to vector<2x4x256xi1>
    %102 = vector.broadcast %cst_32 : f32 to vector<2x4x256xf32>
    %103 = arith.select %101, %98, %102 : vector<2x4x256xi1>, vector<2x4x256xf32>
    %c8 = arith.constant 8 : index
    %c0_33 = arith.constant 0 : index
    %c0_34 = arith.constant 0 : index
    %104 = vector.load %arg2[%c8, %c0_33, %c0_34] : memref<9x4x1xf32, #tpu.memory_space<vmem>>, vector<1x4x1xf32>
    %105 = vector.shape_cast %104 : vector<1x4x1xf32> to vector<4x1xf32>
    %106 = vector.shape_cast %105 : vector<4x1xf32> to vector<1x4x1xf32>
    %107 = vector.broadcast %106 : vector<1x4x1xf32> to vector<2x4x256xf32>
    %108 = arith.mulf %103, %107 : vector<2x4x256xf32>
    %109 = arith.addf %97, %108 : vector<2x4x256xf32>
    %c0_35 = arith.constant 0 : index
    %c0_36 = arith.constant 0 : index
    %c0_37 = arith.constant 0 : index
    %110 = vector.load %arg3[%c0_35, %c0_36, %c0_37] : memref<8x4x1xf32, #tpu.memory_space<vmem>>, vector<1x4x1xf32>
    %111 = vector.shape_cast %110 : vector<1x4x1xf32> to vector<4x1xf32>
    %112 = vector.shape_cast %111 : vector<4x1xf32> to vector<1x4x1xf32>
    %113 = vector.broadcast %112 : vector<1x4x1xf32> to vector<2x4x256xf32>
    %114 = arith.mulf %109, %113 : vector<2x4x256xf32>
    %cst_38 = arith.constant dense<0.000000e+00> : vector<2x256xf32>
    %115 = vector.multi_reduction <add>, %114, %cst_38 [1] : vector<2x4x256xf32> to vector<2x256xf32>
    %c0_39 = arith.constant 0 : index
    %c0_40 = arith.constant 0 : index
    %116 = vector.load %arg4[%c0_39, %c0_40] : memref<8x1xf32, #tpu.memory_space<vmem>>, vector<1x1xf32>
    %117 = vector.shape_cast %116 : vector<1x1xf32> to vector<1xf32>
    %118 = vector.shape_cast %117 : vector<1xf32> to vector<1x1xf32>
    %119 = vector.broadcast %118 : vector<1x1xf32> to vector<2x256xf32>
    %120 = arith.addf %115, %119 : vector<2x256xf32>
    %c0_41 = arith.constant 0 : index
    %c0_42 = arith.constant 0 : index
    %c0_43 = arith.constant 0 : index
    %121 = vector.load %arg6[%c0_41, %c0_42, %c0_43] : memref<2x8x256xf32, #tpu.memory_space<vmem>>, vector<2x1x256xf32>
    %122 = vector.shape_cast %121 : vector<2x1x256xf32> to vector<2x256xf32>
    %123 = vector.shape_cast %120 : vector<2x256xf32> to vector<2x1x256xf32>
    tpu.vector_store %arg6[%c0_41, %c0_42, %c0_43], %123 {strides = array<i32>} : memref<2x8x256xf32, #tpu.memory_space<vmem>>, vector<2x1x256xf32>,
    %c1_44 = arith.constant 1 : index
    %c0_45 = arith.constant 0 : index
    %c0_46 = arith.constant 0 : index
    %124 = vector.load %arg3[%c1_44, %c0_45, %c0_46] : memref<8x4x1xf32, #tpu.memory_space<vmem>>, vector<1x4x1xf32>
    %125 = vector.shape_cast %124 : vector<1x4x1xf32> to vector<4x1xf32>
    %126 = vector.shape_cast %125 : vector<4x1xf32> to vector<1x4x1xf32>
    %127 = vector.broadcast %126 : vector<1x4x1xf32> to vector<2x4x256xf32>
    %128 = arith.mulf %109, %127 : vector<2x4x256xf32>
    %cst_47 = arith.constant dense<0.000000e+00> : vector<2x256xf32>
    %129 = vector.multi_reduction <add>, %128, %cst_47 [1] : vector<2x4x256xf32> to vector<2x256xf32>
    %c1_48 = arith.constant 1 : index
    %c0_49 = arith.constant 0 : index
    %130 = vector.load %arg4[%c1_48, %c0_49] : memref<8x1xf32, #tpu.memory_space<vmem>>, vector<1x1xf32>
    %131 = vector.shape_cast %130 : vector<1x1xf32> to vector<1xf32>
    %132 = vector.shape_cast %131 : vector<1xf32> to vector<1x1xf32>
    %133 = vector.broadcast %132 : vector<1x1xf32> to vector<2x256xf32>
    %134 = arith.addf %129, %133 : vector<2x256xf32>
    %c0_50 = arith.constant 0 : index
    %c1_51 = arith.constant 1 : index
    %c0_52 = arith.constant 0 : index
    %135 = vector.load %arg6[%c0_50, %c1_51, %c0_52] : memref<2x8x256xf32, #tpu.memory_space<vmem>>, vector<2x1x256xf32>
    %136 = vector.shape_cast %135 : vector<2x1x256xf32> to vector<2x256xf32>
    %137 = vector.shape_cast %134 : vector<2x256xf32> to vector<2x1x256xf32>
    tpu.vector_store %arg6[%c0_50, %c1_51, %c0_52], %137 {strides = array<i32>} : memref<2x8x256xf32, #tpu.memory_space<vmem>>, vector<2x1x256xf32>,
    %c2_53 = arith.constant 2 : index
    %c0_54 = arith.constant 0 : index
    %c0_55 = arith.constant 0 : index
    %138 = vector.load %arg3[%c2_53, %c0_54, %c0_55] : memref<8x4x1xf32, #tpu.memory_space<vmem>>, vector<1x4x1xf32>
    %139 = vector.shape_cast %138 : vector<1x4x1xf32> to vector<4x1xf32>
    %140 = vector.shape_cast %139 : vector<4x1xf32> to vector<1x4x1xf32>
    %141 = vector.broadcast %140 : vector<1x4x1xf32> to vector<2x4x256xf32>
    %142 = arith.mulf %109, %141 : vector<2x4x256xf32>
    %cst_56 = arith.constant dense<0.000000e+00> : vector<2x256xf32>
    %143 = vector.multi_reduction <add>, %142, %cst_56 [1] : vector<2x4x256xf32> to vector<2x256xf32>
    %c2_57 = arith.constant 2 : index
    %c0_58 = arith.constant 0 : index
    %144 = vector.load %arg4[%c2_57, %c0_58] : memref<8x1xf32, #tpu.memory_space<vmem>>, vector<1x1xf32>
    %145 = vector.shape_cast %144 : vector<1x1xf32> to vector<1xf32>
    %146 = vector.shape_cast %145 : vector<1xf32> to vector<1x1xf32>
    %147 = vector.broadcast %146 : vector<1x1xf32> to vector<2x256xf32>
    %148 = arith.addf %143, %147 : vector<2x256xf32>
    %c0_59 = arith.constant 0 : index
    %c2_60 = arith.constant 2 : index
    %c0_61 = arith.constant 0 : index
    %149 = vector.load %arg6[%c0_59, %c2_60, %c0_61] : memref<2x8x256xf32, #tpu.memory_space<vmem>>, vector<2x1x256xf32>
    %150 = vector.shape_cast %149 : vector<2x1x256xf32> to vector<2x256xf32>
    %151 = vector.shape_cast %148 : vector<2x256xf32> to vector<2x1x256xf32>
    tpu.vector_store %arg6[%c0_59, %c2_60, %c0_61], %151 {strides = array<i32>} : memref<2x8x256xf32, #tpu.memory_space<vmem>>, vector<2x1x256xf32>,
    %c3_62 = arith.constant 3 : index
    %c0_63 = arith.constant 0 : index
    %c0_64 = arith.constant 0 : index
    %152 = vector.load %arg3[%c3_62, %c0_63, %c0_64] : memref<8x4x1xf32, #tpu.memory_space<vmem>>, vector<1x4x1xf32>
    %153 = vector.shape_cast %152 : vector<1x4x1xf32> to vector<4x1xf32>
    %154 = vector.shape_cast %153 : vector<4x1xf32> to vector<1x4x1xf32>
    %155 = vector.broadcast %154 : vector<1x4x1xf32> to vector<2x4x256xf32>
    %156 = arith.mulf %109, %155 : vector<2x4x256xf32>
    %cst_65 = arith.constant dense<0.000000e+00> : vector<2x256xf32>
    %157 = vector.multi_reduction <add>, %156, %cst_65 [1] : vector<2x4x256xf32> to vector<2x256xf32>
    %c3_66 = arith.constant 3 : index
    %c0_67 = arith.constant 0 : index
    %158 = vector.load %arg4[%c3_66, %c0_67] : memref<8x1xf32, #tpu.memory_space<vmem>>, vector<1x1xf32>
    %159 = vector.shape_cast %158 : vector<1x1xf32> to vector<1xf32>
    %160 = vector.shape_cast %159 : vector<1xf32> to vector<1x1xf32>
    %161 = vector.broadcast %160 : vector<1x1xf32> to vector<2x256xf32>
    %162 = arith.addf %157, %161 : vector<2x256xf32>
    %c0_68 = arith.constant 0 : index
    %c3_69 = arith.constant 3 : index
    %c0_70 = arith.constant 0 : index
    %163 = vector.load %arg6[%c0_68, %c3_69, %c0_70] : memref<2x8x256xf32, #tpu.memory_space<vmem>>, vector<2x1x256xf32>
    %164 = vector.shape_cast %163 : vector<2x1x256xf32> to vector<2x256xf32>
    %165 = vector.shape_cast %162 : vector<2x256xf32> to vector<2x1x256xf32>
    tpu.vector_store %arg6[%c0_68, %c3_69, %c0_70], %165 {strides = array<i32>} : memref<2x8x256xf32, #tpu.memory_space<vmem>>, vector<2x1x256xf32>,
    %c4_71 = arith.constant 4 : index
    %c0_72 = arith.constant 0 : index
    %c0_73 = arith.constant 0 : index
    %166 = vector.load %arg3[%c4_71, %c0_72, %c0_73] : memref<8x4x1xf32, #tpu.memory_space<vmem>>, vector<1x4x1xf32>
    %167 = vector.shape_cast %166 : vector<1x4x1xf32> to vector<4x1xf32>
    %168 = vector.shape_cast %167 : vector<4x1xf32> to vector<1x4x1xf32>
    %169 = vector.broadcast %168 : vector<1x4x1xf32> to vector<2x4x256xf32>
    %170 = arith.mulf %109, %169 : vector<2x4x256xf32>
    %cst_74 = arith.constant dense<0.000000e+00> : vector<2x256xf32>
    %171 = vector.multi_reduction <add>, %170, %cst_74 [1] : vector<2x4x256xf32> to vector<2x256xf32>
    %c4_75 = arith.constant 4 : index
    %c0_76 = arith.constant 0 : index
    %172 = vector.load %arg4[%c4_75, %c0_76] : memref<8x1xf32, #tpu.memory_space<vmem>>, vector<1x1xf32>
    %173 = vector.shape_cast %172 : vector<1x1xf32> to vector<1xf32>
    %174 = vector.shape_cast %173 : vector<1xf32> to vector<1x1xf32>
    %175 = vector.broadcast %174 : vector<1x1xf32> to vector<2x256xf32>
    %176 = arith.addf %171, %175 : vector<2x256xf32>
    %c0_77 = arith.constant 0 : index
    %c4_78 = arith.constant 4 : index
    %c0_79 = arith.constant 0 : index
    %177 = vector.load %arg6[%c0_77, %c4_78, %c0_79] : memref<2x8x256xf32, #tpu.memory_space<vmem>>, vector<2x1x256xf32>
    %178 = vector.shape_cast %177 : vector<2x1x256xf32> to vector<2x256xf32>
    %179 = vector.shape_cast %176 : vector<2x256xf32> to vector<2x1x256xf32>
    tpu.vector_store %arg6[%c0_77, %c4_78, %c0_79], %179 {strides = array<i32>} : memref<2x8x256xf32, #tpu.memory_space<vmem>>, vector<2x1x256xf32>,
    %c5_80 = arith.constant 5 : index
    %c0_81 = arith.constant 0 : index
    %c0_82 = arith.constant 0 : index
    %180 = vector.load %arg3[%c5_80, %c0_81, %c0_82] : memref<8x4x1xf32, #tpu.memory_space<vmem>>, vector<1x4x1xf32>
    %181 = vector.shape_cast %180 : vector<1x4x1xf32> to vector<4x1xf32>
    %182 = vector.shape_cast %181 : vector<4x1xf32> to vector<1x4x1xf32>
    %183 = vector.broadcast %182 : vector<1x4x1xf32> to vector<2x4x256xf32>
    %184 = arith.mulf %109, %183 : vector<2x4x256xf32>
    %cst_83 = arith.constant dense<0.000000e+00> : vector<2x256xf32>
    %185 = vector.multi_reduction <add>, %184, %cst_83 [1] : vector<2x4x256xf32> to vector<2x256xf32>
    %c5_84 = arith.constant 5 : index
    %c0_85 = arith.constant 0 : index
    %186 = vector.load %arg4[%c5_84, %c0_85] : memref<8x1xf32, #tpu.memory_space<vmem>>, vector<1x1xf32>
    %187 = vector.shape_cast %186 : vector<1x1xf32> to vector<1xf32>
    %188 = vector.shape_cast %187 : vector<1xf32> to vector<1x1xf32>
    %189 = vector.broadcast %188 : vector<1x1xf32> to vector<2x256xf32>
    %190 = arith.addf %185, %189 : vector<2x256xf32>
    %c0_86 = arith.constant 0 : index
    %c5_87 = arith.constant 5 : index
    %c0_88 = arith.constant 0 : index
    %191 = vector.load %arg6[%c0_86, %c5_87, %c0_88] : memref<2x8x256xf32, #tpu.memory_space<vmem>>, vector<2x1x256xf32>
    %192 = vector.shape_cast %191 : vector<2x1x256xf32> to vector<2x256xf32>
    %193 = vector.shape_cast %190 : vector<2x256xf32> to vector<2x1x256xf32>
    tpu.vector_store %arg6[%c0_86, %c5_87, %c0_88], %193 {strides = array<i32>} : memref<2x8x256xf32, #tpu.memory_space<vmem>>, vector<2x1x256xf32>,
    %c6_89 = arith.constant 6 : index
    %c0_90 = arith.constant 0 : index
    %c0_91 = arith.constant 0 : index
    %194 = vector.load %arg3[%c6_89, %c0_90, %c0_91] : memref<8x4x1xf32, #tpu.memory_space<vmem>>, vector<1x4x1xf32>
    %195 = vector.shape_cast %194 : vector<1x4x1xf32> to vector<4x1xf32>
    %196 = vector.shape_cast %195 : vector<4x1xf32> to vector<1x4x1xf32>
    %197 = vector.broadcast %196 : vector<1x4x1xf32> to vector<2x4x256xf32>
    %198 = arith.mulf %109, %197 : vector<2x4x256xf32>
    %cst_92 = arith.constant dense<0.000000e+00> : vector<2x256xf32>
    %199 = vector.multi_reduction <add>, %198, %cst_92 [1] : vector<2x4x256xf32> to vector<2x256xf32>
    %c6_93 = arith.constant 6 : index
    %c0_94 = arith.constant 0 : index
    %200 = vector.load %arg4[%c6_93, %c0_94] : memref<8x1xf32, #tpu.memory_space<vmem>>, vector<1x1xf32>
    %201 = vector.shape_cast %200 : vector<1x1xf32> to vector<1xf32>
    %202 = vector.shape_cast %201 : vector<1xf32> to vector<1x1xf32>
    %203 = vector.broadcast %202 : vector<1x1xf32> to vector<2x256xf32>
    %204 = arith.addf %199, %203 : vector<2x256xf32>
    %c0_95 = arith.constant 0 : index
    %c6_96 = arith.constant 6 : index
    %c0_97 = arith.constant 0 : index
    %205 = vector.load %arg6[%c0_95, %c6_96, %c0_97] : memref<2x8x256xf32, #tpu.memory_space<vmem>>, vector<2x1x256xf32>
    %206 = vector.shape_cast %205 : vector<2x1x256xf32> to vector<2x256xf32>
    %207 = vector.shape_cast %204 : vector<2x256xf32> to vector<2x1x256xf32>
    tpu.vector_store %arg6[%c0_95, %c6_96, %c0_97], %207 {strides = array<i32>} : memref<2x8x256xf32, #tpu.memory_space<vmem>>, vector<2x1x256xf32>,
    %c7_98 = arith.constant 7 : index
    %c0_99 = arith.constant 0 : index
    %c0_100 = arith.constant 0 : index
    %208 = vector.load %arg3[%c7_98, %c0_99, %c0_100] : memref<8x4x1xf32, #tpu.memory_space<vmem>>, vector<1x4x1xf32>
    %209 = vector.shape_cast %208 : vector<1x4x1xf32> to vector<4x1xf32>
    %210 = vector.shape_cast %209 : vector<4x1xf32> to vector<1x4x1xf32>
    %211 = vector.broadcast %210 : vector<1x4x1xf32> to vector<2x4x256xf32>
    %212 = arith.mulf %109, %211 : vector<2x4x256xf32>
    %cst_101 = arith.constant dense<0.000000e+00> : vector<2x256xf32>
    %213 = vector.multi_reduction <add>, %212, %cst_101 [1] : vector<2x4x256xf32> to vector<2x256xf32>
    %c7_102 = arith.constant 7 : index
    %c0_103 = arith.constant 0 : index
    %214 = vector.load %arg4[%c7_102, %c0_103] : memref<8x1xf32, #tpu.memory_space<vmem>>, vector<1x1xf32>
    %215 = vector.shape_cast %214 : vector<1x1xf32> to vector<1xf32>
    %216 = vector.shape_cast %215 : vector<1xf32> to vector<1x1xf32>
    %217 = vector.broadcast %216 : vector<1x1xf32> to vector<2x256xf32>
    %218 = arith.addf %213, %217 : vector<2x256xf32>
    %c0_104 = arith.constant 0 : index
    %c7_105 = arith.constant 7 : index
    %c0_106 = arith.constant 0 : index
    %219 = vector.load %arg6[%c0_104, %c7_105, %c0_106] : memref<2x8x256xf32, #tpu.memory_space<vmem>>, vector<2x1x256xf32>
    %220 = vector.shape_cast %219 : vector<2x1x256xf32> to vector<2x256xf32>
    %221 = vector.shape_cast %218 : vector<2x256xf32> to vector<2x1x256xf32>
    tpu.vector_store %arg6[%c0_104, %c7_105, %c0_106], %221 {strides = array<i32>} : memref<2x8x256xf32, #tpu.memory_space<vmem>>, vector<2x1x256xf32>,
    return
  }
  func.func @transform_0(%arg0: i32) -> (i32, i32, i32) {
    %c0_i32 = arith.constant 0 : i32
    %c0_i32_0 = arith.constant 0 : i32
    %c0_i32_1 = arith.constant 0 : i32
    return %arg0, %c0_i32, %c0_i32_0 : i32, i32, i32
  }
  func.func @transform_1(%arg0: i32) -> (i32, i32, i32) {
    %c0_i32 = arith.constant 0 : i32
    %c0_i32_0 = arith.constant 0 : i32
    %c0_i32_1 = arith.constant 0 : i32
    %c0_i32_2 = arith.constant 0 : i32
    return %c0_i32, %c0_i32_0, %c0_i32_1 : i32, i32, i32
  }
  func.func @transform_2(%arg0: i32) -> (i32, i32, i32) {
    %c0_i32 = arith.constant 0 : i32
    %c0_i32_0 = arith.constant 0 : i32
    %c0_i32_1 = arith.constant 0 : i32
    %c0_i32_2 = arith.constant 0 : i32
    return %c0_i32, %c0_i32_0, %c0_i32_1 : i32, i32, i32
  }
  func.func @transform_3(%arg0: i32) -> (i32, i32) {
    %c0_i32 = arith.constant 0 : i32
    %c0_i32_0 = arith.constant 0 : i32
    %c0_i32_1 = arith.constant 0 : i32
    return %c0_i32, %c0_i32_0 : i32, i32
  }
  func.func @transform_4(%arg0: i32) -> (i32, i32) {
    %c0_i32 = arith.constant 0 : i32
    %c0_i32_0 = arith.constant 0 : i32
    %c0_i32_1 = arith.constant 0 : i32
    return %c0_i32, %c0_i32_0 : i32, i32
  }
  func.func @transform_5(%arg0: i32) -> (i32, i32, i32) {
    %c0_i32 = arith.constant 0 : i32
    %c0_i32_0 = arith.constant 0 : i32
    %c0_i32_1 = arith.constant 0 : i32
    return %arg0, %c0_i32, %c0_i32_0 : i32, i32, i32
  }
}

</mosaic_0001>

<llo_original>
// kernel: tpu_custom_call.1
$region0: #{tpu_custom_call.1}
  #allocation0 [shape = 'u32[]', space=smem, size = 0x4, offset = 0x4, fixed_abs, tag = 'smem constant byte address 0x4 - core index']
  #allocation1 [shape = 'u32[144,128]{1,0:T(1,128)}', space=vmem, size = 0x12000, scoped, tag = 'internal scratch']
  %s0 = inlined_call_operand.vmem [shape: f32[2,4,256], index: 0, kind: input, shape index: {}]
  %s1 = inlined_call_operand.vmem [shape: f32[9,4,1], index: 1, kind: input, shape index: {}]
  %s2 = inlined_call_operand.vmem [shape: f32[8,4,1], index: 2, kind: input, shape index: {}]
  %s3 = inlined_call_operand.vmem [shape: f32[8,1], index: 3, kind: input, shape index: {}]
  %s4 = inlined_call_operand.vmem [shape: s32[2,256], index: 4, kind: input, shape index: {}]
  %s5 = inlined_call_operand.hbm [shape: f32[2,8,256], index: 5, kind: output, shape index: {}]
  %s6 = sld [smem:[#allocation0]]
  $region30: #{tpu_custom_call.1} parent=0
    _
  %s8 = ssub.s32 1, %s6
  %s9 = scalar_select 0, %s8, %s6
  $region1: #{tpu_custom_call.1} parent=0
    #allocation2 [shape = 'u8[16384]{0}', space=vmem, size = 0x4000, scoped, tag = 'output window, operand 0, single buffered']
    #allocation3 [shape = 's32[1]{0}', space=sflag, size = 0x4, scoped, tag = 'scoped memory for tpu_custom_call.1']
    %10 = vsyncpa [#allocation3], 0
    // Predicated region
    $region2: #{tpu_custom_call.1} parent=1 // pred_check
      _
    $region3: #{tpu_custom_call.1} parent=1 // pred_check_branch
      %12 = sbr.rel (0) target = $region5
    $region4: #{tpu_custom_call.1} parent=1 // pred_region
      _
    $region5: #{tpu_custom_call.1} parent=1 // pred_fallthru
      _
    // Predicated region
    $region6: #{tpu_custom_call.1} parent=1 // pred_check
      _
    $region7: #{tpu_custom_call.1} parent=1 // pred_check_branch
      %14 = sbr.rel (0) target = $region9
    $region8: #{tpu_custom_call.1} parent=1 // pred_region
      _
    $region9: #{tpu_custom_call.1} parent=1 // pred_fallthru
      _
    // Predicated region
    $region10: #{tpu_custom_call.1} parent=1 // pred_check
      _
    $region11: #{tpu_custom_call.1} parent=1 // pred_check_branch
      %16 = sbr.rel (0) target = $region13
    $region12: #{tpu_custom_call.1} parent=1 // pred_region
      _
    $region13: #{tpu_custom_call.1} parent=1 // pred_fallthru
      _
    // Predicated region
    $region14: #{tpu_custom_call.1} parent=1 // pred_check
      _
    $region15: #{tpu_custom_call.1} parent=1 // pred_check_branch
      %18 = sbr.rel (0) target = $region17
    $region16: #{tpu_custom_call.1} parent=1 // pred_region
      _
    $region17: #{tpu_custom_call.1} parent=1 // pred_fallthru
      _
    // Predicated region
    $region18: #{tpu_custom_call.1} parent=1 // pred_check
      _
    $region19: #{tpu_custom_call.1} parent=1 // pred_check_branch
      %20 = sbr.rel (0) target = $region21
    $region20: #{tpu_custom_call.1} parent=1 // pred_region
      _
    $region21: #{tpu_custom_call.1} parent=1 // pred_fallthru
      _
    %v21 = vld [vmem:[%s0] sm:$0xff]
    %v22 = vld [vmem:[%s0 + $0x8] sm:$0xff]
    %v23 = vld [vmem:[%s4] ss:$2 sm:$0x3]
    %s24 = scalar_lea.vmem %s4, 1
    %v25 = vld [vmem:[%s24] ss:$2 sm:$0x3]
    %vm26 = vcmp.ge.s32.totalorder %v23, 1
    %vm27 = vcmp.le.s32.totalorder %v23, 14
    %vm28 = vcmp.ge.s32.totalorder %v25, 1
    %vm29 = vcmp.le.s32.totalorder %v25, 14
    %v32 = vcombine.high %v21, %v21
    %v33 = vcombine.high %v22, %v22
    %36 = vrot.lane.b32.xlu0 %v21, 17
    %v37 = vpop.permute.xlu0 %36
    %38 = vrot.lane.b32.xlu0 %v22, 17
    %v39 = vpop.permute.xlu0 %38
    %40 = vrot.lane.b32.xlu0 %v32, 17
    %v41 = vpop.permute.xlu0 %40
    %42 = vrot.lane.b32.xlu0 %v33, 17
    %v43 = vpop.permute.xlu0 %42
    %v44 = vlaneseq
    %v45 = vand.u32 %v44, 127
    %vm46 = vcmp.lt.s32.totalorder %v45, 17
    %v47 = vsel %vm46, %v37, %v41
    %v48 = vsel %vm46, %v39, %v43
    %v49 = vsel %vm46, %v41, %v37
    %v50 = vsel %vm46, %v43, %v39
    %vm51 = vmand %vm26, %vm28
    %v52 = vsel %vm51, 1, 0
    %vm53 = vcmp.eq.s32.totalorder %v52, 1
    %v58 = vcombine.low %v49, %v47
    %v60 = vunpack.c.l.s4 1966171168
    %v61 = vunpack.c.0.s8 %v60
    %v62 = vlaneseq
    %v63 = vshrl.u32 %v62, 7
    %v64 = vsub.s32 %v61, %v63
    %v65 = vrot.slane %v58, %v64
    %v66 = vcombine.high %v65, %v65
    %v68 = vunpack.c.l.s4 1966171168
    %v69 = vunpack.c.0.s8 %v68
    %v70 = vlaneseq
    %v71 = vshrl.u32 %v70, 7
    %v72 = vsub.s32 %v69, %v71
    %v73 = vrot.slane %v65, %v72
    %v75 = vunpack.c.l.s4 1966171168
    %v76 = vunpack.c.0.s8 %v75
    %v77 = vlaneseq
    %v78 = vshrl.u32 %v77, 7
    %v79 = vsub.s32 %v76, %v78
    %v80 = vrot.slane %v66, %v79
    %v81 = vcombine.high %v73, %v73
    %v82 = vcombine.high %v80, %v80
    %v83 = vcombine.low %v50, %v48
    %v85 = vunpack.c.l.s4 1966171168
    %v86 = vunpack.c.0.s8 %v85
    %v87 = vlaneseq
    %v88 = vshrl.u32 %v87, 7
    %v89 = vsub.s32 %v86, %v88
    %v90 = vrot.slane %v83, %v89
    %v91 = vcombine.high %v90, %v90
    %v93 = vunpack.c.l.s4 1966171168
    %v94 = vunpack.c.0.s8 %v93
    %v95 = vlaneseq
    %v96 = vshrl.u32 %v95, 7
    %v97 = vsub.s32 %v94, %v96
    %v98 = vrot.slane %v90, %v97
    %v100 = vunpack.c.l.s4 1966171168
    %v101 = vunpack.c.0.s8 %v100
    %v102 = vlaneseq
    %v103 = vshrl.u32 %v102, 7
    %v104 = vsub.s32 %v101, %v103
    %v105 = vrot.slane %v91, %v104
    %v106 = vcombine.high %v98, %v98
    %v107 = vcombine.high %v105, %v105
    %v116 = vsel %vm53, %v73, 0.0
    %v117 = vsel %vm53, %v80, 0.0
    %v118 = vsel %vm53, %v81, 0.0
    %v119 = vsel %vm53, %v82, 0.0
    %v120 = vsel %vm53, %v98, 0.0
    %v121 = vsel %vm53, %v105, 0.0
    %v122 = vsel %vm53, %v106, 0.0
    %v123 = vsel %vm53, %v107, 0.0
    %v124 = vld [vmem:[%s1] sm:$0xf]
    %126 = vset.pattern.permute.xlu0 0
    %127 = vperm.xlu0 %126, %v124
    %v128 = vpop.permute.xlu0 %127
    %v129 = vlaneseq
    %v130 = vshrl.u32 %v129, 7
    %v131 = vsub.s32 0, %v130
    %v132 = vrot.slane %v128, %v131
    %v133 = vlaneseq
    %v134 = vshrl.u32 %v133, 7
    %v135 = vsub.s32 1, %v134
    %v136 = vrot.slane %v128, %v135
    %v137 = vlaneseq
    %v138 = vshrl.u32 %v137, 7
    %v139 = vsub.s32 2, %v138
    %v140 = vrot.slane %v128, %v139
    %v141 = vlaneseq
    %v142 = vshrl.u32 %v141, 7
    %v143 = vsub.s32 3, %v142
    %v144 = vrot.slane %v128, %v143
    %v149 = vmul.f32 %v116, %v132
    %v150 = vmul.f32 %v117, %v136
    %v151 = vmul.f32 %v118, %v140
    %v152 = vmul.f32 %v119, %v144
    %v153 = vmul.f32 %v120, %v132
    %v154 = vmul.f32 %v121, %v136
    %v155 = vmul.f32 %v122, %v140
    %v156 = vmul.f32 %v123, %v144
    %157 = vrot.lane.b32.xlu0 %v21, 16
    %v158 = vpop.permute.xlu0 %157
    %159 = vrot.lane.b32.xlu0 %v22, 16
    %v160 = vpop.permute.xlu0 %159
    %161 = vrot.lane.b32.xlu0 %v32, 16
    %v162 = vpop.permute.xlu0 %161
    %163 = vrot.lane.b32.xlu0 %v33, 16
    %v164 = vpop.permute.xlu0 %163
    %vm165 = vcmp.lt.s32.totalorder %v45, 16
    %v166 = vsel %vm165, %v158, %v162
    %v167 = vsel %vm165, %v160, %v164
    %v168 = vsel %vm165, %v162, %v158
    %v169 = vsel %vm165, %v164, %v160
    %v170 = vsel %vm26, 1, 0
    %vm171 = vcmp.eq.s32.totalorder %v170, 1
    %v176 = vcombine.low %v168, %v166
    %v178 = vunpack.c.l.s4 1966171168
    %v179 = vunpack.c.0.s8 %v178
    %v180 = vlaneseq
    %v181 = vshrl.u32 %v180, 7
    %v182 = vsub.s32 %v179, %v181
    %v183 = vrot.slane %v176, %v182
    %v184 = vcombine.high %v183, %v183
    %v186 = vunpack.c.l.s4 1966171168
    %v187 = vunpack.c.0.s8 %v186
    %v188 = vlaneseq
    %v189 = vshrl.u32 %v188, 7
    %v190 = vsub.s32 %v187, %v189
    %v191 = vrot.slane %v183, %v190
    %v193 = vunpack.c.l.s4 1966171168
    %v194 = vunpack.c.0.s8 %v193
    %v195 = vlaneseq
    %v196 = vshrl.u32 %v195, 7
    %v197 = vsub.s32 %v194, %v196
    %v198 = vrot.slane %v184, %v197
    %v199 = vcombine.high %v191, %v191
    %v200 = vcombine.high %v198, %v198
    %v201 = vcombine.low %v169, %v167
    %v203 = vunpack.c.l.s4 1966171168
    %v204 = vunpack.c.0.s8 %v203
    %v205 = vlaneseq
    %v206 = vshrl.u32 %v205, 7
    %v207 = vsub.s32 %v204, %v206
    %v208 = vrot.slane %v201, %v207
    %v209 = vcombine.high %v208, %v208
    %v211 = vunpack.c.l.s4 1966171168
    %v212 = vunpack.c.0.s8 %v211
    %v213 = vlaneseq
    %v214 = vshrl.u32 %v213, 7
    %v215 = vsub.s32 %v212, %v214
    %v216 = vrot.slane %v208, %v215
    %v218 = vunpack.c.l.s4 1966171168
    %v219 = vunpack.c.0.s8 %v218
    %v220 = vlaneseq
    %v221 = vshrl.u32 %v220, 7
    %v222 = vsub.s32 %v219, %v221
    %v223 = vrot.slane %v209, %v222
    %v224 = vcombine.high %v216, %v216
    %v225 = vcombine.high %v223, %v223
    %v234 = vsel %vm171, %v191, 0.0
    %v235 = vsel %vm171, %v198, 0.0
    %v236 = vsel %vm171, %v199, 0.0
    %v237 = vsel %vm171, %v200, 0.0
    %v238 = vsel %vm171, %v216, 0.0
    %v239 = vsel %vm171, %v223, 0.0
    %v240 = vsel %vm171, %v224, 0.0
    %v241 = vsel %vm171, %v225, 0.0
    %s242 = scalar_lea.vmem %s1, 4
    %v243 = vld [vmem:[%s242] sm:$0xf]
    %245 = vset.pattern.permute.xlu0 0
    %246 = vperm.xlu0 %245, %v243
    %v247 = vpop.permute.xlu0 %246
    %v248 = vlaneseq
    %v249 = vshrl.u32 %v248, 7
    %v250 = vsub.s32 0, %v249
    %v251 = vrot.slane %v247, %v250
    %v252 = vlaneseq
    %v253 = vshrl.u32 %v252, 7
    %v254 = vsub.s32 1, %v253
    %v255 = vrot.slane %v247, %v254
    %v256 = vlaneseq
    %v257 = vshrl.u32 %v256, 7
    %v258 = vsub.s32 2, %v257
    %v259 = vrot.slane %v247, %v258
    %v260 = vlaneseq
    %v261 = vshrl.u32 %v260, 7
    %v262 = vsub.s32 3, %v261
    %v263 = vrot.slane %v247, %v262
    %v268 = vmul.f32 %v234, %v251
    %v269 = vmul.f32 %v235, %v255
    %v270 = vmul.f32 %v236, %v259
    %v271 = vmul.f32 %v237, %v263
    %v272 = vmul.f32 %v238, %v251
    %v273 = vmul.f32 %v239, %v255
    %v274 = vmul.f32 %v240, %v259
    %v275 = vmul.f32 %v241, %v263
    %v276 = vadd.f32 %v149, %v268
    %v277 = vadd.f32 %v150, %v269
    %v278 = vadd.f32 %v151, %v270
    %v279 = vadd.f32 %v152, %v271
    %v280 = vadd.f32 %v153, %v272
    %v281 = vadd.f32 %v154, %v273
    %v282 = vadd.f32 %v155, %v274
    %v283 = vadd.f32 %v156, %v275
    %284 = vrot.lane.b32.xlu0 %v21, 15
    %v285 = vpop.permute.xlu0 %284
    %286 = vrot.lane.b32.xlu0 %v22, 15
    %v287 = vpop.permute.xlu0 %286
    %288 = vrot.lane.b32.xlu0 %v32, 15
    %v289 = vpop.permute.xlu0 %288
    %290 = vrot.lane.b32.xlu0 %v33, 15
    %v291 = vpop.permute.xlu0 %290
    %vm292 = vcmp.lt.s32.totalorder %v45, 15
    %v293 = vsel %vm292, %v285, %v289
    %v294 = vsel %vm292, %v287, %v291
    %v295 = vsel %vm292, %v289, %v285
    %v296 = vsel %vm292, %v291, %v287
    %vm297 = vmand %vm26, %vm29
    %v298 = vsel %vm297, 1, 0
    %vm299 = vcmp.eq.s32.totalorder %v298, 1
    %v304 = vcombine.low %v295, %v293
    %v306 = vunpack.c.l.s4 1966171168
    %v307 = vunpack.c.0.s8 %v306
    %v308 = vlaneseq
    %v309 = vshrl.u32 %v308, 7
    %v310 = vsub.s32 %v307, %v309
    %v311 = vrot.slane %v304, %v310
    %v312 = vcombine.high %v311, %v311
    %v314 = vunpack.c.l.s4 1966171168
    %v315 = vunpack.c.0.s8 %v314
    %v316 = vlaneseq
    %v317 = vshrl.u32 %v316, 7
    %v318 = vsub.s32 %v315, %v317
    %v319 = vrot.slane %v311, %v318
    %v321 = vunpack.c.l.s4 1966171168
    %v322 = vunpack.c.0.s8 %v321
    %v323 = vlaneseq
    %v324 = vshrl.u32 %v323, 7
    %v325 = vsub.s32 %v322, %v324
    %v326 = vrot.slane %v312, %v325
    %v327 = vcombine.high %v319, %v319
    %v328 = vcombine.high %v326, %v326
    %v329 = vcombine.low %v296, %v294
    %v331 = vunpack.c.l.s4 1966171168
    %v332 = vunpack.c.0.s8 %v331
    %v333 = vlaneseq
    %v334 = vshrl.u32 %v333, 7
    %v335 = vsub.s32 %v332, %v334
    %v336 = vrot.slane %v329, %v335
    %v337 = vcombine.high %v336, %v336
    %v339 = vunpack.c.l.s4 1966171168
    %v340 = vunpack.c.0.s8 %v339
    %v341 = vlaneseq
    %v342 = vshrl.u32 %v341, 7
    %v343 = vsub.s32 %v340, %v342
    %v344 = vrot.slane %v336, %v343
    %v346 = vunpack.c.l.s4 1966171168
    %v347 = vunpack.c.0.s8 %v346
    %v348 = vlaneseq
    %v349 = vshrl.u32 %v348, 7
    %v350 = vsub.s32 %v347, %v349
    %v351 = vrot.slane %v337, %v350
    %v352 = vcombine.high %v344, %v344
    %v353 = vcombine.high %v351, %v351
    %v362 = vsel %vm299, %v319, 0.0
    %v363 = vsel %vm299, %v326, 0.0
    %v364 = vsel %vm299, %v327, 0.0
    %v365 = vsel %vm299, %v328, 0.0
    %v366 = vsel %vm299, %v344, 0.0
    %v367 = vsel %vm299, %v351, 0.0
    %v368 = vsel %vm299, %v352, 0.0
    %v369 = vsel %vm299, %v353, 0.0
    %s370 = scalar_lea.vmem %s1, 8
    %v371 = vld [vmem:[%s370] sm:$0xf]
    %373 = vset.pattern.permute.xlu0 0
    %374 = vperm.xlu0 %373, %v371
    %v375 = vpop.permute.xlu0 %374
    %v376 = vlaneseq
    %v377 = vshrl.u32 %v376, 7
    %v378 = vsub.s32 0, %v377
    %v379 = vrot.slane %v375, %v378
    %v380 = vlaneseq
    %v381 = vshrl.u32 %v380, 7
    %v382 = vsub.s32 1, %v381
    %v383 = vrot.slane %v375, %v382
    %v384 = vlaneseq
    %v385 = vshrl.u32 %v384, 7
    %v386 = vsub.s32 2, %v385
    %v387 = vrot.slane %v375, %v386
    %v388 = vlaneseq
    %v389 = vshrl.u32 %v388, 7
    %v390 = vsub.s32 3, %v389
    %v391 = vrot.slane %v375, %v390
    %v396 = vmul.f32 %v362, %v379
    %v397 = vmul.f32 %v363, %v383
    %v398 = vmul.f32 %v364, %v387
    %v399 = vmul.f32 %v365, %v391
    %v400 = vmul.f32 %v366, %v379
    %v401 = vmul.f32 %v367, %v383
    %v402 = vmul.f32 %v368, %v387
    %v403 = vmul.f32 %v369, %v391
    %v404 = vadd.f32 %v276, %v396
    %v405 = vadd.f32 %v277, %v397
    %v406 = vadd.f32 %v278, %v398
    %v407 = vadd.f32 %v279, %v399
    %v408 = vadd.f32 %v280, %v400
    %v409 = vadd.f32 %v281, %v401
    %v410 = vadd.f32 %v282, %v402
    %v411 = vadd.f32 %v283, %v403
    %412 = vrot.lane.b32.xlu0 %v21, 1
    %v413 = vpop.permute.xlu0 %412
    %414 = vrot.lane.b32.xlu0 %v22, 1
    %v415 = vpop.permute.xlu0 %414
    %416 = vrot.lane.b32.xlu0 %v32, 1
    %v417 = vpop.permute.xlu0 %416
    %418 = vrot.lane.b32.xlu0 %v33, 1
    %v419 = vpop.permute.xlu0 %418
    %vm420 = vcmp.lt.s32.totalorder %v45, 1
    %v421 = vsel %vm420, %v413, %v417
    %v422 = vsel %vm420, %v415, %v419
    %v423 = vsel %vm420, %v417, %v413
    %v424 = vsel %vm420, %v419, %v415
    %v425 = vsel %vm28, 1, 0
    %vm426 = vcmp.eq.s32.totalorder %v425, 1
    %v431 = vcombine.low %v423, %v421
    %v433 = vunpack.c.l.s4 1966171168
    %v434 = vunpack.c.0.s8 %v433
    %v435 = vlaneseq
    %v436 = vshrl.u32 %v435, 7
    %v437 = vsub.s32 %v434, %v436
    %v438 = vrot.slane %v431, %v437
    %v439 = vcombine.high %v438, %v438
    %v441 = vunpack.c.l.s4 1966171168
    %v442 = vunpack.c.0.s8 %v441
    %v443 = vlaneseq
    %v444 = vshrl.u32 %v443, 7
    %v445 = vsub.s32 %v442, %v444
    %v446 = vrot.slane %v438, %v445
    %v448 = vunpack.c.l.s4 1966171168
    %v449 = vunpack.c.0.s8 %v448
    %v450 = vlaneseq
    %v451 = vshrl.u32 %v450, 7
    %v452 = vsub.s32 %v449, %v451
    %v453 = vrot.slane %v439, %v452
    %v454 = vcombine.high %v446, %v446
    %v455 = vcombine.high %v453, %v453
    %v456 = vcombine.low %v424, %v422
    %v458 = vunpack.c.l.s4 1966171168
    %v459 = vunpack.c.0.s8 %v458
    %v460 = vlaneseq
    %v461 = vshrl.u32 %v460, 7
    %v462 = vsub.s32 %v459, %v461
    %v463 = vrot.slane %v456, %v462
    %v464 = vcombine.high %v463, %v463
    %v466 = vunpack.c.l.s4 1966171168
    %v467 = vunpack.c.0.s8 %v466
    %v468 = vlaneseq
    %v469 = vshrl.u32 %v468, 7
    %v470 = vsub.s32 %v467, %v469
    %v471 = vrot.slane %v463, %v470
    %v473 = vunpack.c.l.s4 1966171168
    %v474 = vunpack.c.0.s8 %v473
    %v475 = vlaneseq
    %v476 = vshrl.u32 %v475, 7
    %v477 = vsub.s32 %v474, %v476
    %v478 = vrot.slane %v464, %v477
    %v479 = vcombine.high %v471, %v471
    %v480 = vcombine.high %v478, %v478
    %v489 = vsel %vm426, %v446, 0.0
    %v490 = vsel %vm426, %v453, 0.0
    %v491 = vsel %vm426, %v454, 0.0
    %v492 = vsel %vm426, %v455, 0.0
    %v493 = vsel %vm426, %v471, 0.0
    %v494 = vsel %vm426, %v478, 0.0
    %v495 = vsel %vm426, %v479, 0.0
    %v496 = vsel %vm426, %v480, 0.0
    %s497 = scalar_lea.vmem %s1, 12
    %v498 = vld [vmem:[%s497] sm:$0xf]
    %500 = vset.pattern.permute.xlu0 0
    %501 = vperm.xlu0 %500, %v498
    %v502 = vpop.permute.xlu0 %501
    %v503 = vlaneseq
    %v504 = vshrl.u32 %v503, 7
    %v505 = vsub.s32 0, %v504
    %v506 = vrot.slane %v502, %v505
    %v507 = vlaneseq
    %v508 = vshrl.u32 %v507, 7
    %v509 = vsub.s32 1, %v508
    %v510 = vrot.slane %v502, %v509
    %v511 = vlaneseq
    %v512 = vshrl.u32 %v511, 7
    %v513 = vsub.s32 2, %v512
    %v514 = vrot.slane %v502, %v513
    %v515 = vlaneseq
    %v516 = vshrl.u32 %v515, 7
    %v517 = vsub.s32 3, %v516
    %v518 = vrot.slane %v502, %v517
    %v523 = vmul.f32 %v489, %v506
    %v524 = vmul.f32 %v490, %v510
    %v525 = vmul.f32 %v491, %v514
    %v526 = vmul.f32 %v492, %v518
    %v527 = vmul.f32 %v493, %v506
    %v528 = vmul.f32 %v494, %v510
    %v529 = vmul.f32 %v495, %v514
    %v530 = vmul.f32 %v496, %v518
    %v531 = vadd.f32 %v404, %v523
    %v532 = vadd.f32 %v405, %v524
    %v533 = vadd.f32 %v406, %v525
    %v534 = vadd.f32 %v407, %v526
    %v535 = vadd.f32 %v408, %v527
    %v536 = vadd.f32 %v409, %v528
    %v537 = vadd.f32 %v410, %v529
    %v538 = vadd.f32 %v411, %v530
    %s539 = scalar_lea.vmem %s1, 16
    %v540 = vld [vmem:[%s539] sm:$0xf]
    %542 = vset.pattern.permute.xlu0 0
    %543 = vperm.xlu0 %542, %v540
    %v544 = vpop.permute.xlu0 %543
    %v546 = vunpack.c.l.s4 839922192
    %v547 = vunpack.c.0.s8 %v546
    %v548 = vlaneseq
    %v549 = vshrl.u32 %v548, 7
    %v550 = vsub.s32 %v547, %v549
    %v551 = vrot.slane %v544, %v550
    %v553 = vmul.f32 %v21, %v551
    %v554 = vmul.f32 %v22, %v551
    %v558 = vunpack.c.l.s4 1966171168
    %v559 = vunpack.c.0.s8 %v558
    %v560 = vlaneseq
    %v561 = vshrl.u32 %v560, 7
    %v562 = vsub.s32 %v559, %v561
    %v563 = vrot.slane %v553, %v562
    %v564 = vcombine.high %v563, %v563
    %v566 = vunpack.c.l.s4 1966171168
    %v567 = vunpack.c.0.s8 %v566
    %v568 = vlaneseq
    %v569 = vshrl.u32 %v568, 7
    %v570 = vsub.s32 %v567, %v569
    %v571 = vrot.slane %v563, %v570
    %v573 = vunpack.c.l.s4 1966171168
    %v574 = vunpack.c.0.s8 %v573
    %v575 = vlaneseq
    %v576 = vshrl.u32 %v575, 7
    %v577 = vsub.s32 %v574, %v576
    %v578 = vrot.slane %v564, %v577
    %v579 = vcombine.high %v571, %v571
    %v580 = vcombine.high %v578, %v578
    %v582 = vunpack.c.l.s4 1966171168
    %v583 = vunpack.c.0.s8 %v582
    %v584 = vlaneseq
    %v585 = vshrl.u32 %v584, 7
    %v586 = vsub.s32 %v583, %v585
    %v587 = vrot.slane %v554, %v586
    %v588 = vcombine.high %v587, %v587
    %v590 = vunpack.c.l.s4 1966171168
    %v591 = vunpack.c.0.s8 %v590
    %v592 = vlaneseq
    %v593 = vshrl.u32 %v592, 7
    %v594 = vsub.s32 %v591, %v593
    %v595 = vrot.slane %v587, %v594
    %v597 = vunpack.c.l.s4 1966171168
    %v598 = vunpack.c.0.s8 %v597
    %v599 = vlaneseq
    %v600 = vshrl.u32 %v599, 7
    %v601 = vsub.s32 %v598, %v600
    %v602 = vrot.slane %v588, %v601
    %v603 = vcombine.high %v595, %v595
    %v604 = vcombine.high %v602, %v602
    %v613 = vadd.f32 %v531, %v571
    %v614 = vadd.f32 %v532, %v578
    %v615 = vadd.f32 %v533, %v579
    %v616 = vadd.f32 %v534, %v580
    %v617 = vadd.f32 %v535, %v595
    %v618 = vadd.f32 %v536, %v602
    %v619 = vadd.f32 %v537, %v603
    %v620 = vadd.f32 %v538, %v604
    %621 = vrot.lane.b32.xlu0 %v21, 127
    %v622 = vpop.permute.xlu0 %621
    %623 = vrot.lane.b32.xlu0 %v22, 127
    %v624 = vpop.permute.xlu0 %623
    %625 = vrot.lane.b32.xlu0 %v32, 127
    %v626 = vpop.permute.xlu0 %625
    %627 = vrot.lane.b32.xlu0 %v33, 127
    %v628 = vpop.permute.xlu0 %627
    %vm629 = vcmp.lt.s32.totalorder %v45, 127
    %v630 = vsel %vm629, %v622, %v626
    %v631 = vsel %vm629, %v624, %v628
    %v632 = vsel %vm629, %v626, %v622
    %v633 = vsel %vm629, %v628, %v624
    %v634 = vsel %vm29, 1, 0
    %vm635 = vcmp.eq.s32.totalorder %v634, 1
    %v640 = vcombine.low %v630, %v632
    %v642 = vunpack.c.l.s4 1966171168
    %v643 = vunpack.c.0.s8 %v642
    %v644 = vlaneseq
    %v645 = vshrl.u32 %v644, 7
    %v646 = vsub.s32 %v643, %v645
    %v647 = vrot.slane %v640, %v646
    %v648 = vcombine.high %v647, %v647
    %v650 = vunpack.c.l.s4 1966171168
    %v651 = vunpack.c.0.s8 %v650
    %v652 = vlaneseq
    %v653 = vshrl.u32 %v652, 7
    %v654 = vsub.s32 %v651, %v653
    %v655 = vrot.slane %v647, %v654
    %v657 = vunpack.c.l.s4 1966171168
    %v658 = vunpack.c.0.s8 %v657
    %v659 = vlaneseq
    %v660 = vshrl.u32 %v659, 7
    %v661 = vsub.s32 %v658, %v660
    %v662 = vrot.slane %v648, %v661
    %v663 = vcombine.high %v655, %v655
    %v664 = vcombine.high %v662, %v662
    %v665 = vcombine.low %v631, %v633
    %v667 = vunpack.c.l.s4 1966171168
    %v668 = vunpack.c.0.s8 %v667
    %v669 = vlaneseq
    %v670 = vshrl.u32 %v669, 7
    %v671 = vsub.s32 %v668, %v670
    %v672 = vrot.slane %v665, %v671
    %v673 = vcombine.high %v672, %v672
    %v675 = vunpack.c.l.s4 1966171168
    %v676 = vunpack.c.0.s8 %v675
    %v677 = vlaneseq
    %v678 = vshrl.u32 %v677, 7
    %v679 = vsub.s32 %v676, %v678
    %v680 = vrot.slane %v672, %v679
    %v682 = vunpack.c.l.s4 1966171168
    %v683 = vunpack.c.0.s8 %v682
    %v684 = vlaneseq
    %v685 = vshrl.u32 %v684, 7
    %v686 = vsub.s32 %v683, %v685
    %v687 = vrot.slane %v673, %v686
    %v688 = vcombine.high %v680, %v680
    %v689 = vcombine.high %v687, %v687
    %v698 = vsel %vm635, %v655, 0.0
    %v699 = vsel %vm635, %v662, 0.0
    %v700 = vsel %vm635, %v663, 0.0
    %v701 = vsel %vm635, %v664, 0.0
    %v702 = vsel %vm635, %v680, 0.0
    %v703 = vsel %vm635, %v687, 0.0
    %v704 = vsel %vm635, %v688, 0.0
    %v705 = vsel %vm635, %v689, 0.0
    %s706 = scalar_lea.vmem %s1, 20
    %v707 = vld [vmem:[%s706] sm:$0xf]
    %709 = vset.pattern.permute.xlu0 0
    %710 = vperm.xlu0 %709, %v707
    %v711 = vpop.permute.xlu0 %710
    %v712 = vlaneseq
    %v713 = vshrl.u32 %v712, 7
    %v714 = vsub.s32 0, %v713
    %v715 = vrot.slane %v711, %v714
    %v716 = vlaneseq
    %v717 = vshrl.u32 %v716, 7
    %v718 = vsub.s32 1, %v717
    %v719 = vrot.slane %v711, %v718
    %v720 = vlaneseq
    %v721 = vshrl.u32 %v720, 7
    %v722 = vsub.s32 2, %v721
    %v723 = vrot.slane %v711, %v722
    %v724 = vlaneseq
    %v725 = vshrl.u32 %v724, 7
    %v726 = vsub.s32 3, %v725
    %v727 = vrot.slane %v711, %v726
    %v732 = vmul.f32 %v698, %v715
    %v733 = vmul.f32 %v699, %v719
    %v734 = vmul.f32 %v700, %v723
    %v735 = vmul.f32 %v701, %v727
    %v736 = vmul.f32 %v702, %v715
    %v737 = vmul.f32 %v703, %v719
    %v738 = vmul.f32 %v704, %v723
    %v739 = vmul.f32 %v705, %v727
    %v740 = vadd.f32 %v613, %v732
    %v741 = vadd.f32 %v614, %v733
    %v742 = vadd.f32 %v615, %v734
    %v743 = vadd.f32 %v616, %v735
    %v744 = vadd.f32 %v617, %v736
    %v745 = vadd.f32 %v618, %v737
    %v746 = vadd.f32 %v619, %v738
    %v747 = vadd.f32 %v620, %v739
    %748 = vrot.lane.b32.xlu0 %v21, 113
    %v749 = vpop.permute.xlu0 %748
    %750 = vrot.lane.b32.xlu0 %v22, 113
    %v751 = vpop.permute.xlu0 %750
    %752 = vrot.lane.b32.xlu0 %v32, 113
    %v753 = vpop.permute.xlu0 %752
    %754 = vrot.lane.b32.xlu0 %v33, 113
    %v755 = vpop.permute.xlu0 %754
    %vm756 = vcmp.lt.s32.totalorder %v45, 113
    %v757 = vsel %vm756, %v749, %v753
    %v758 = vsel %vm756, %v751, %v755
    %v759 = vsel %vm756, %v753, %v749
    %v760 = vsel %vm756, %v755, %v751
    %vm761 = vmand %vm27, %vm28
    %v762 = vsel %vm761, 1, 0
    %vm763 = vcmp.eq.s32.totalorder %v762, 1
    %v768 = vcombine.low %v757, %v759
    %v770 = vunpack.c.l.s4 1966171168
    %v771 = vunpack.c.0.s8 %v770
    %v772 = vlaneseq
    %v773 = vshrl.u32 %v772, 7
    %v774 = vsub.s32 %v771, %v773
    %v775 = vrot.slane %v768, %v774
    %v776 = vcombine.high %v775, %v775
    %v778 = vunpack.c.l.s4 1966171168
    %v779 = vunpack.c.0.s8 %v778
    %v780 = vlaneseq
    %v781 = vshrl.u32 %v780, 7
    %v782 = vsub.s32 %v779, %v781
    %v783 = vrot.slane %v775, %v782
    %v785 = vunpack.c.l.s4 1966171168
    %v786 = vunpack.c.0.s8 %v785
    %v787 = vlaneseq
    %v788 = vshrl.u32 %v787, 7
    %v789 = vsub.s32 %v786, %v788
    %v790 = vrot.slane %v776, %v789
    %v791 = vcombine.high %v783, %v783
    %v792 = vcombine.high %v790, %v790
    %v793 = vcombine.low %v758, %v760
    %v795 = vunpack.c.l.s4 1966171168
    %v796 = vunpack.c.0.s8 %v795
    %v797 = vlaneseq
    %v798 = vshrl.u32 %v797, 7
    %v799 = vsub.s32 %v796, %v798
    %v800 = vrot.slane %v793, %v799
    %v801 = vcombine.high %v800, %v800
    %v803 = vunpack.c.l.s4 1966171168
    %v804 = vunpack.c.0.s8 %v803
    %v805 = vlaneseq
    %v806 = vshrl.u32 %v805, 7
    %v807 = vsub.s32 %v804, %v806
    %v808 = vrot.slane %v800, %v807
    %v810 = vunpack.c.l.s4 1966171168
    %v811 = vunpack.c.0.s8 %v810
    %v812 = vlaneseq
    %v813 = vshrl.u32 %v812, 7
    %v814 = vsub.s32 %v811, %v813
    %v815 = vrot.slane %v801, %v814
    %v816 = vcombine.high %v808, %v808
    %v817 = vcombine.high %v815, %v815
    %v826 = vsel %vm763, %v783, 0.0
    %v827 = vsel %vm763, %v790, 0.0
    %v828 = vsel %vm763, %v791, 0.0
    %v829 = vsel %vm763, %v792, 0.0
    %v830 = vsel %vm763, %v808, 0.0
    %v831 = vsel %vm763, %v815, 0.0
    %v832 = vsel %vm763, %v816, 0.0
    %v833 = vsel %vm763, %v817, 0.0
    %s834 = scalar_lea.vmem %s1, 24
    %v835 = vld [vmem:[%s834] sm:$0xf]
    %837 = vset.pattern.permute.xlu0 0
    %838 = vperm.xlu0 %837, %v835
    %v839 = vpop.permute.xlu0 %838
    %v840 = vlaneseq
    %v841 = vshrl.u32 %v840, 7
    %v842 = vsub.s32 0, %v841
    %v843 = vrot.slane %v839, %v842
    %v844 = vlaneseq
    %v845 = vshrl.u32 %v844, 7
    %v846 = vsub.s32 1, %v845
    %v847 = vrot.slane %v839, %v846
    %v848 = vlaneseq
    %v849 = vshrl.u32 %v848, 7
    %v850 = vsub.s32 2, %v849
    %v851 = vrot.slane %v839, %v850
    %v852 = vlaneseq
    %v853 = vshrl.u32 %v852, 7
    %v854 = vsub.s32 3, %v853
    %v855 = vrot.slane %v839, %v854
    %v860 = vmul.f32 %v826, %v843
    %v861 = vmul.f32 %v827, %v847
    %v862 = vmul.f32 %v828, %v851
    %v863 = vmul.f32 %v829, %v855
    %v864 = vmul.f32 %v830, %v843
    %v865 = vmul.f32 %v831, %v847
    %v866 = vmul.f32 %v832, %v851
    %v867 = vmul.f32 %v833, %v855
    %v868 = vadd.f32 %v740, %v860
    %v869 = vadd.f32 %v741, %v861
    %v870 = vadd.f32 %v742, %v862
    %v871 = vadd.f32 %v743, %v863
    %v872 = vadd.f32 %v744, %v864
    %v873 = vadd.f32 %v745, %v865
    %v874 = vadd.f32 %v746, %v866
    %v875 = vadd.f32 %v747, %v867
    %876 = vrot.lane.b32.xlu0 %v21, 112
    %v877 = vpop.permute.xlu0 %876
    %878 = vrot.lane.b32.xlu0 %v22, 112
    %v879 = vpop.permute.xlu0 %878
    %880 = vrot.lane.b32.xlu0 %v32, 112
    %v881 = vpop.permute.xlu0 %880
    %882 = vrot.lane.b32.xlu0 %v33, 112
    %v883 = vpop.permute.xlu0 %882
    %vm884 = vcmp.lt.s32.totalorder %v45, 112
    %v885 = vsel %vm884, %v877, %v881
    %v886 = vsel %vm884, %v879, %v883
    %v887 = vsel %vm884, %v881, %v877
    %v888 = vsel %vm884, %v883, %v879
    %v889 = vsel %vm27, 1, 0
    %vm890 = vcmp.eq.s32.totalorder %v889, 1
    %v895 = vcombine.low %v885, %v887
    %v897 = vunpack.c.l.s4 1966171168
    %v898 = vunpack.c.0.s8 %v897
    %v899 = vlaneseq
    %v900 = vshrl.u32 %v899, 7
    %v901 = vsub.s32 %v898, %v900
    %v902 = vrot.slane %v895, %v901
    %v903 = vcombine.high %v902, %v902
    %v905 = vunpack.c.l.s4 1966171168
    %v906 = vunpack.c.0.s8 %v905
    %v907 = vlaneseq
    %v908 = vshrl.u32 %v907, 7
    %v909 = vsub.s32 %v906, %v908
    %v910 = vrot.slane %v902, %v909
    %v912 = vunpack.c.l.s4 1966171168
    %v913 = vunpack.c.0.s8 %v912
    %v914 = vlaneseq
    %v915 = vshrl.u32 %v914, 7
    %v916 = vsub.s32 %v913, %v915
    %v917 = vrot.slane %v903, %v916
    %v918 = vcombine.high %v910, %v910
    %v919 = vcombine.high %v917, %v917
    %v920 = vcombine.low %v886, %v888
    %v922 = vunpack.c.l.s4 1966171168
    %v923 = vunpack.c.0.s8 %v922
    %v924 = vlaneseq
    %v925 = vshrl.u32 %v924, 7
    %v926 = vsub.s32 %v923, %v925
    %v927 = vrot.slane %v920, %v926
    %v928 = vcombine.high %v927, %v927
    %v930 = vunpack.c.l.s4 1966171168
    %v931 = vunpack.c.0.s8 %v930
    %v932 = vlaneseq
    %v933 = vshrl.u32 %v932, 7
    %v934 = vsub.s32 %v931, %v933
    %v935 = vrot.slane %v927, %v934
    %v937 = vunpack.c.l.s4 1966171168
    %v938 = vunpack.c.0.s8 %v937
    %v939 = vlaneseq
    %v940 = vshrl.u32 %v939, 7
    %v941 = vsub.s32 %v938, %v940
    %v942 = vrot.slane %v928, %v941
    %v943 = vcombine.high %v935, %v935
    %v944 = vcombine.high %v942, %v942
    %v953 = vsel %vm890, %v910, 0.0
    %v954 = vsel %vm890, %v917, 0.0
    %v955 = vsel %vm890, %v918, 0.0
    %v956 = vsel %vm890, %v919, 0.0
    %v957 = vsel %vm890, %v935, 0.0
    %v958 = vsel %vm890, %v942, 0.0
    %v959 = vsel %vm890, %v943, 0.0
    %v960 = vsel %vm890, %v944, 0.0
    %s961 = scalar_lea.vmem %s1, 28
    %v962 = vld [vmem:[%s961] sm:$0xf]
    %964 = vset.pattern.permute.xlu0 0
    %965 = vperm.xlu0 %964, %v962
    %v966 = vpop.permute.xlu0 %965
    %v967 = vlaneseq
    %v968 = vshrl.u32 %v967, 7
    %v969 = vsub.s32 0, %v968
    %v970 = vrot.slane %v966, %v969
    %v971 = vlaneseq
    %v972 = vshrl.u32 %v971, 7
    %v973 = vsub.s32 1, %v972
    %v974 = vrot.slane %v966, %v973
    %v975 = vlaneseq
    %v976 = vshrl.u32 %v975, 7
    %v977 = vsub.s32 2, %v976
    %v978 = vrot.slane %v966, %v977
    %v979 = vlaneseq
    %v980 = vshrl.u32 %v979, 7
    %v981 = vsub.s32 3, %v980
    %v982 = vrot.slane %v966, %v981
    %v987 = vmul.f32 %v953, %v970
    %v988 = vmul.f32 %v954, %v974
    %v989 = vmul.f32 %v955, %v978
    %v990 = vmul.f32 %v956, %v982
    %v991 = vmul.f32 %v957, %v970
    %v992 = vmul.f32 %v958, %v974
    %v993 = vmul.f32 %v959, %v978
    %v994 = vmul.f32 %v960, %v982
    %v995 = vadd.f32 %v868, %v987
    %v996 = vadd.f32 %v869, %v988
    %v997 = vadd.f32 %v870, %v989
    %v998 = vadd.f32 %v871, %v990
    %v999 = vadd.f32 %v872, %v991
    %v1000 = vadd.f32 %v873, %v992
    %v1001 = vadd.f32 %v874, %v993
    %v1002 = vadd.f32 %v875, %v994
    %1003 = vrot.lane.b32.xlu0 %v21, 111
    %v1004 = vpop.permute.xlu0 %1003
    %1005 = vrot.lane.b32.xlu0 %v22, 111
    %v1006 = vpop.permute.xlu0 %1005
    %1007 = vrot.lane.b32.xlu0 %v32, 111
    %v1008 = vpop.permute.xlu0 %1007
    %1009 = vrot.lane.b32.xlu0 %v33, 111
    %v1010 = vpop.permute.xlu0 %1009
    %vm1011 = vcmp.lt.s32.totalorder %v45, 111
    %v1012 = vsel %vm1011, %v1004, %v1008
    %v1013 = vsel %vm1011, %v1006, %v1010
    %v1014 = vsel %vm1011, %v1008, %v1004
    %v1015 = vsel %vm1011, %v1010, %v1006
    %vm1016 = vmand %vm27, %vm29
    %v1017 = vsel %vm1016, 1, 0
    %vm1018 = vcmp.eq.s32.totalorder %v1017, 1
    %v1023 = vcombine.low %v1012, %v1014
    %v1025 = vunpack.c.l.s4 1966171168
    %v1026 = vunpack.c.0.s8 %v1025
    %v1027 = vlaneseq
    %v1028 = vshrl.u32 %v1027, 7
    %v1029 = vsub.s32 %v1026, %v1028
    %v1030 = vrot.slane %v1023, %v1029
    %v1031 = vcombine.high %v1030, %v1030
    %v1033 = vunpack.c.l.s4 1966171168
    %v1034 = vunpack.c.0.s8 %v1033
    %v1035 = vlaneseq
    %v1036 = vshrl.u32 %v1035, 7
    %v1037 = vsub.s32 %v1034, %v1036
    %v1038 = vrot.slane %v1030, %v1037
    %v1040 = vunpack.c.l.s4 1966171168
    %v1041 = vunpack.c.0.s8 %v1040
    %v1042 = vlaneseq
    %v1043 = vshrl.u32 %v1042, 7
    %v1044 = vsub.s32 %v1041, %v1043
    %v1045 = vrot.slane %v1031, %v1044
    %v1046 = vcombine.high %v1038, %v1038
    %v1047 = vcombine.high %v1045, %v1045
    %v1048 = vcombine.low %v1013, %v1015
    %v1050 = vunpack.c.l.s4 1966171168
    %v1051 = vunpack.c.0.s8 %v1050
    %v1052 = vlaneseq
    %v1053 = vshrl.u32 %v1052, 7
    %v1054 = vsub.s32 %v1051, %v1053
    %v1055 = vrot.slane %v1048, %v1054
    %v1056 = vcombine.high %v1055, %v1055
    %v1058 = vunpack.c.l.s4 1966171168
    %v1059 = vunpack.c.0.s8 %v1058
    %v1060 = vlaneseq
    %v1061 = vshrl.u32 %v1060, 7
    %v1062 = vsub.s32 %v1059, %v1061
    %v1063 = vrot.slane %v1055, %v1062
    %v1065 = vunpack.c.l.s4 1966171168
    %v1066 = vunpack.c.0.s8 %v1065
    %v1067 = vlaneseq
    %v1068 = vshrl.u32 %v1067, 7
    %v1069 = vsub.s32 %v1066, %v1068
    %v1070 = vrot.slane %v1056, %v1069
    %v1071 = vcombine.high %v1063, %v1063
    %v1072 = vcombine.high %v1070, %v1070
    %v1081 = vsel %vm1018, %v1038, 0.0
    %v1082 = vsel %vm1018, %v1045, 0.0
    %v1083 = vsel %vm1018, %v1046, 0.0
    %v1084 = vsel %vm1018, %v1047, 0.0
    %v1085 = vsel %vm1018, %v1063, 0.0
    %v1086 = vsel %vm1018, %v1070, 0.0
    %v1087 = vsel %vm1018, %v1071, 0.0
    %v1088 = vsel %vm1018, %v1072, 0.0
    %s1089 = scalar_lea.vmem %s1, 32
    %v1090 = vld [vmem:[%s1089] sm:$0xf]
    %1092 = vset.pattern.permute.xlu0 0
    %1093 = vperm.xlu0 %1092, %v1090
    %v1094 = vpop.permute.xlu0 %1093
    %v1095 = vlaneseq
    %v1096 = vshrl.u32 %v1095, 7
    %v1097 = vsub.s32 0, %v1096
    %v1098 = vrot.slane %v1094, %v1097
    %v1099 = vlaneseq
    %v1100 = vshrl.u32 %v1099, 7
    %v1101 = vsub.s32 1, %v1100
    %v1102 = vrot.slane %v1094, %v1101
    %v1103 = vlaneseq
    %v1104 = vshrl.u32 %v1103, 7
    %v1105 = vsub.s32 2, %v1104
    %v1106 = vrot.slane %v1094, %v1105
    %v1107 = vlaneseq
    %v1108 = vshrl.u32 %v1107, 7
    %v1109 = vsub.s32 3, %v1108
    %v1110 = vrot.slane %v1094, %v1109
    %v1115 = vmul.f32 %v1081, %v1098
    %v1116 = vmul.f32 %v1082, %v1102
    %v1117 = vmul.f32 %v1083, %v1106
    %v1118 = vmul.f32 %v1084, %v1110
    %v1119 = vmul.f32 %v1085, %v1098
    %v1120 = vmul.f32 %v1086, %v1102
    %v1121 = vmul.f32 %v1087, %v1106
    %v1122 = vmul.f32 %v1088, %v1110
    %v1123 = vadd.f32 %v995, %v1115
    %v1124 = vadd.f32 %v996, %v1116
    %v1125 = vadd.f32 %v997, %v1117
    %v1126 = vadd.f32 %v998, %v1118
    %v1127 = vadd.f32 %v999, %v1119
    %v1128 = vadd.f32 %v1000, %v1120
    %v1129 = vadd.f32 %v1001, %v1121
    %v1130 = vadd.f32 %v1002, %v1122
    %v1131 = vld [vmem:[%s2] sm:$0xf]
    %1133 = vset.pattern.permute.xlu0 0
    %1134 = vperm.xlu0 %1133, %v1131
    %v1135 = vpop.permute.xlu0 %1134
    %v1136 = vlaneseq
    %v1137 = vshrl.u32 %v1136, 7
    %v1138 = vsub.s32 0, %v1137
    %v1139 = vrot.slane %v1135, %v1138
    %v1140 = vlaneseq
    %v1141 = vshrl.u32 %v1140, 7
    %v1142 = vsub.s32 1, %v1141
    %v1143 = vrot.slane %v1135, %v1142
    %v1144 = vlaneseq
    %v1145 = vshrl.u32 %v1144, 7
    %v1146 = vsub.s32 2, %v1145
    %v1147 = vrot.slane %v1135, %v1146
    %v1148 = vlaneseq
    %v1149 = vshrl.u32 %v1148, 7
    %v1150 = vsub.s32 3, %v1149
    %v1151 = vrot.slane %v1135, %v1150
    %v1156 = vmul.f32 %v1123, %v1139
    %v1157 = vmul.f32 %v1124, %v1143
    %v1158 = vmul.f32 %v1125, %v1147
    %v1159 = vmul.f32 %v1126, %v1151
    %v1160 = vmul.f32 %v1127, %v1139
    %v1161 = vmul.f32 %v1128, %v1143
    %v1162 = vmul.f32 %v1129, %v1147
    %v1163 = vmul.f32 %v1130, %v1151
    %v1172 = vcombine.low %v1156, %v1157
    %v1173 = vcombine.low %v1158, %v1159
    %v1175 = vunpack.c.l.s4 1966171168
    %v1176 = vunpack.c.0.s8 %v1175
    %v1177 = vlaneseq
    %v1178 = vshrl.u32 %v1177, 7
    %v1179 = vsub.s32 %v1176, %v1178
    %v1180 = vrot.slane %v1172, %v1179
    %v1182 = vunpack.c.l.s4 1966171168
    %v1183 = vunpack.c.0.s8 %v1182
    %v1184 = vlaneseq
    %v1185 = vshrl.u32 %v1184, 7
    %v1186 = vsub.s32 %v1183, %v1185
    %v1187 = vrot.slane %v1173, %v1186
    %v1188 = vcombine.low %v1180, %v1187
    %v1189 = vcombine.high %v1180, %v1187
    %v1191 = vunpack.c.l.s4 1966171168
    %v1192 = vunpack.c.0.s8 %v1191
    %v1193 = vlaneseq
    %v1194 = vshrl.u32 %v1193, 7
    %v1195 = vsub.s32 %v1192, %v1194
    %v1196 = vrot.slane %v1188, %v1195
    %v1198 = vunpack.c.l.s4 1966171168
    %v1199 = vunpack.c.0.s8 %v1198
    %v1200 = vlaneseq
    %v1201 = vshrl.u32 %v1200, 7
    %v1202 = vsub.s32 %v1199, %v1201
    %v1203 = vrot.slane %v1189, %v1202
    %v1204 = vcombine.low %v1160, %v1161
    %v1205 = vcombine.low %v1162, %v1163
    %v1207 = vunpack.c.l.s4 1966171168
    %v1208 = vunpack.c.0.s8 %v1207
    %v1209 = vlaneseq
    %v1210 = vshrl.u32 %v1209, 7
    %v1211 = vsub.s32 %v1208, %v1210
    %v1212 = vrot.slane %v1204, %v1211
    %v1214 = vunpack.c.l.s4 1966171168
    %v1215 = vunpack.c.0.s8 %v1214
    %v1216 = vlaneseq
    %v1217 = vshrl.u32 %v1216, 7
    %v1218 = vsub.s32 %v1215, %v1217
    %v1219 = vrot.slane %v1205, %v1218
    %v1220 = vcombine.low %v1212, %v1219
    %v1221 = vcombine.high %v1212, %v1219
    %v1223 = vunpack.c.l.s4 1966171168
    %v1224 = vunpack.c.0.s8 %v1223
    %v1225 = vlaneseq
    %v1226 = vshrl.u32 %v1225, 7
    %v1227 = vsub.s32 %v1224, %v1226
    %v1228 = vrot.slane %v1220, %v1227
    %v1230 = vunpack.c.l.s4 1966171168
    %v1231 = vunpack.c.0.s8 %v1230
    %v1232 = vlaneseq
    %v1233 = vshrl.u32 %v1232, 7
    %v1234 = vsub.s32 %v1231, %v1233
    %v1235 = vrot.slane %v1221, %v1234
    %vm1240 = vcmask 1043456
    %v1241 = vsel %vm1240, %v1196, 0.0
    %v1242 = vrot.slane %v1241, 4
    %v1243 = vadd.f32 %v1241, %v1242
    %v1244 = vrot.slane %v1243, 2
    %v1245 = vadd.f32 %v1243, %v1244
    %v1246 = vrot.slane %v1245, 1
    %v1247 = vadd.f32 %v1245, %v1246
    %v1248 = vsel %vm1240, %v1203, 0.0
    %v1249 = vrot.slane %v1248, 4
    %v1250 = vadd.f32 %v1248, %v1249
    %v1251 = vrot.slane %v1250, 2
    %v1252 = vadd.f32 %v1250, %v1251
    %v1253 = vrot.slane %v1252, 1
    %v1254 = vadd.f32 %v1252, %v1253
    %v1255 = vsel %vm1240, %v1228, 0.0
    %v1256 = vrot.slane %v1255, 4
    %v1257 = vadd.f32 %v1255, %v1256
    %v1258 = vrot.slane %v1257, 2
    %v1259 = vadd.f32 %v1257, %v1258
    %v1260 = vrot.slane %v1259, 1
    %v1261 = vadd.f32 %v1259, %v1260
    %v1262 = vsel %vm1240, %v1235, 0.0
    %v1263 = vrot.slane %v1262, 4
    %v1264 = vadd.f32 %v1262, %v1263
    %v1265 = vrot.slane %v1264, 2
    %v1266 = vadd.f32 %v1264, %v1265
    %v1267 = vrot.slane %v1266, 1
    %v1268 = vadd.f32 %v1266, %v1267
    %v1269 = vld [vmem:[%s3] sm:$0x1]
    %s1271 = vtos %v1269
    %v1272 = vstv %s1271
    %v1274 = vadd.f32 %v1247, %v1272
    %v1275 = vadd.f32 %v1254, %v1272
    %v1276 = vadd.f32 %v1261, %v1272
    %v1277 = vadd.f32 %v1268, %v1272
    %v1282 = vcombine.low %v1274, %v1275
    %v1284 = vunpack.c.l.s4 1966171168
    %v1285 = vunpack.c.0.s8 %v1284
    %v1286 = vlaneseq
    %v1287 = vshrl.u32 %v1286, 7
    %v1288 = vsub.s32 %v1285, %v1287
    %v1289 = vrot.slane %v1282, %v1288
    %v1291 = vunpack.c.l.s4 1966171168
    %v1292 = vunpack.c.0.s8 %v1291
    %v1293 = vlaneseq
    %v1294 = vshrl.u32 %v1293, 7
    %v1295 = vsub.s32 %v1292, %v1294
    %v1296 = vrot.slane %v1289, %v1295
    %v1297 = vcombine.low %v1276, %v1277
    %v1299 = vunpack.c.l.s4 1966171168
    %v1300 = vunpack.c.0.s8 %v1299
    %v1301 = vlaneseq
    %v1302 = vshrl.u32 %v1301, 7
    %v1303 = vsub.s32 %v1300, %v1302
    %v1304 = vrot.slane %v1297, %v1303
    %v1306 = vunpack.c.l.s4 1966171168
    %v1307 = vunpack.c.0.s8 %v1306
    %v1308 = vlaneseq
    %v1309 = vshrl.u32 %v1308, 7
    %v1310 = vsub.s32 %v1307, %v1309
    %v1311 = vrot.slane %v1304, %v1310
    %v1314 = vlaneseq
    %vm1315 = vcmp.ge.s32.totalorder %v1314, 0
    %vm1316 = vcmp.lt.s32.totalorder %v1314, 256
    %vm1317 = vmand %vm1315, %vm1316
    %1318 = vst.msk [vmem:[#allocation2] ss:$8 sm:$0x3] %vm1317, %v1296
    %1319 = vst.msk [vmem:[#allocation2] ss:$8 sm:$0x0] %vm1317, %v1296
    %s1320 = scalar_lea.vmem [#allocation2], 16
    %1321 = vst.msk [vmem:[%s1320] ss:$8 sm:$0x3] %vm1317, %v1311
    %1322 = vst.msk [vmem:[%s1320] ss:$8 sm:$0x0] %vm1317, %v1311
    %s1323 = scalar_lea.vmem %s2, 4
    %v1324 = vld [vmem:[%s1323] sm:$0xf]
    %1326 = vset.pattern.permute.xlu0 0
    %1327 = vperm.xlu0 %1326, %v1324
    %v1328 = vpop.permute.xlu0 %1327
    %v1329 = vlaneseq
    %v1330 = vshrl.u32 %v1329, 7
    %v1331 = vsub.s32 0, %v1330
    %v1332 = vrot.slane %v1328, %v1331
    %v1333 = vlaneseq
    %v1334 = vshrl.u32 %v1333, 7
    %v1335 = vsub.s32 1, %v1334
    %v1336 = vrot.slane %v1328, %v1335
    %v1337 = vlaneseq
    %v1338 = vshrl.u32 %v1337, 7
    %v1339 = vsub.s32 2, %v1338
    %v1340 = vrot.slane %v1328, %v1339
    %v1341 = vlaneseq
    %v1342 = vshrl.u32 %v1341, 7
    %v1343 = vsub.s32 3, %v1342
    %v1344 = vrot.slane %v1328, %v1343
    %v1349 = vmul.f32 %v1123, %v1332
    %v1350 = vmul.f32 %v1124, %v1336
    %v1351 = vmul.f32 %v1125, %v1340
    %v1352 = vmul.f32 %v1126, %v1344
    %v1353 = vmul.f32 %v1127, %v1332
    %v1354 = vmul.f32 %v1128, %v1336
    %v1355 = vmul.f32 %v1129, %v1340
    %v1356 = vmul.f32 %v1130, %v1344
    %v1365 = vcombine.low %v1349, %v1350
    %v1366 = vcombine.low %v1351, %v1352
    %v1368 = vunpack.c.l.s4 1966171168
    %v1369 = vunpack.c.0.s8 %v1368
    %v1370 = vlaneseq
    %v1371 = vshrl.u32 %v1370, 7
    %v1372 = vsub.s32 %v1369, %v1371
    %v1373 = vrot.slane %v1365, %v1372
    %v1375 = vunpack.c.l.s4 1966171168
    %v1376 = vunpack.c.0.s8 %v1375
    %v1377 = vlaneseq
    %v1378 = vshrl.u32 %v1377, 7
    %v1379 = vsub.s32 %v1376, %v1378
    %v1380 = vrot.slane %v1366, %v1379
    %v1381 = vcombine.low %v1373, %v1380
    %v1382 = vcombine.high %v1373, %v1380
    %v1384 = vunpack.c.l.s4 1966171168
    %v1385 = vunpack.c.0.s8 %v1384
    %v1386 = vlaneseq
    %v1387 = vshrl.u32 %v1386, 7
    %v1388 = vsub.s32 %v1385, %v1387
    %v1389 = vrot.slane %v1381, %v1388
    %v1391 = vunpack.c.l.s4 1966171168
    %v1392 = vunpack.c.0.s8 %v1391
    %v1393 = vlaneseq
    %v1394 = vshrl.u32 %v1393, 7
    %v1395 = vsub.s32 %v1392, %v1394
    %v1396 = vrot.slane %v1382, %v1395
    %v1397 = vcombine.low %v1353, %v1354
    %v1398 = vcombine.low %v1355, %v1356
    %v1400 = vunpack.c.l.s4 1966171168
    %v1401 = vunpack.c.0.s8 %v1400
    %v1402 = vlaneseq
    %v1403 = vshrl.u32 %v1402, 7
    %v1404 = vsub.s32 %v1401, %v1403
    %v1405 = vrot.slane %v1397, %v1404
    %v1407 = vunpack.c.l.s4 1966171168
    %v1408 = vunpack.c.0.s8 %v1407
    %v1409 = vlaneseq
    %v1410 = vshrl.u32 %v1409, 7
    %v1411 = vsub.s32 %v1408, %v1410
    %v1412 = vrot.slane %v1398, %v1411
    %v1413 = vcombine.low %v1405, %v1412
    %v1414 = vcombine.high %v1405, %v1412
    %v1416 = vunpack.c.l.s4 1966171168
    %v1417 = vunpack.c.0.s8 %v1416
    %v1418 = vlaneseq
    %v1419 = vshrl.u32 %v1418, 7
    %v1420 = vsub.s32 %v1417, %v1419
    %v1421 = vrot.slane %v1413, %v1420
    %v1423 = vunpack.c.l.s4 1966171168
    %v1424 = vunpack.c.0.s8 %v1423
    %v1425 = vlaneseq
    %v1426 = vshrl.u32 %v1425, 7
    %v1427 = vsub.s32 %v1424, %v1426
    %v1428 = vrot.slane %v1414, %v1427
    %v1433 = vsel %vm1240, %v1389, 0.0
    %v1434 = vrot.slane %v1433, 4
    %v1435 = vadd.f32 %v1433, %v1434
    %v1436 = vrot.slane %v1435, 2
    %v1437 = vadd.f32 %v1435, %v1436
    %v1438 = vrot.slane %v1437, 1
    %v1439 = vadd.f32 %v1437, %v1438
    %v1440 = vsel %vm1240, %v1396, 0.0
    %v1441 = vrot.slane %v1440, 4
    %v1442 = vadd.f32 %v1440, %v1441
    %v1443 = vrot.slane %v1442, 2
    %v1444 = vadd.f32 %v1442, %v1443
    %v1445 = vrot.slane %v1444, 1
    %v1446 = vadd.f32 %v1444, %v1445
    %v1447 = vsel %vm1240, %v1421, 0.0
    %v1448 = vrot.slane %v1447, 4
    %v1449 = vadd.f32 %v1447, %v1448
    %v1450 = vrot.slane %v1449, 2
    %v1451 = vadd.f32 %v1449, %v1450
    %v1452 = vrot.slane %v1451, 1
    %v1453 = vadd.f32 %v1451, %v1452
    %v1454 = vsel %vm1240, %v1428, 0.0
    %v1455 = vrot.slane %v1454, 4
    %v1456 = vadd.f32 %v1454, %v1455
    %v1457 = vrot.slane %v1456, 2
    %v1458 = vadd.f32 %v1456, %v1457
    %v1459 = vrot.slane %v1458, 1
    %v1460 = vadd.f32 %v1458, %v1459
    %v1461 = vld [vmem:[%s3 + $0x1] sm:$0x1]
    %s1463 = vtos %v1461
    %v1464 = vstv %s1463
    %v1466 = vadd.f32 %v1439, %v1464
    %v1467 = vadd.f32 %v1446, %v1464
    %v1468 = vadd.f32 %v1453, %v1464
    %v1469 = vadd.f32 %v1460, %v1464
    %v1474 = vcombine.low %v1466, %v1467
    %v1476 = vunpack.c.l.s4 1966171168
    %v1477 = vunpack.c.0.s8 %v1476
    %v1478 = vlaneseq
    %v1479 = vshrl.u32 %v1478, 7
    %v1480 = vsub.s32 %v1477, %v1479
    %v1481 = vrot.slane %v1474, %v1480
    %v1483 = vunpack.c.l.s4 1966171168
    %v1484 = vunpack.c.0.s8 %v1483
    %v1485 = vlaneseq
    %v1486 = vshrl.u32 %v1485, 7
    %v1487 = vsub.s32 %v1484, %v1486
    %v1488 = vrot.slane %v1481, %v1487
    %v1489 = vcombine.low %v1468, %v1469
    %v1491 = vunpack.c.l.s4 1966171168
    %v1492 = vunpack.c.0.s8 %v1491
    %v1493 = vlaneseq
    %v1494 = vshrl.u32 %v1493, 7
    %v1495 = vsub.s32 %v1492, %v1494
    %v1496 = vrot.slane %v1489, %v1495
    %v1498 = vunpack.c.l.s4 1966171168
    %v1499 = vunpack.c.0.s8 %v1498
    %v1500 = vlaneseq
    %v1501 = vshrl.u32 %v1500, 7
    %v1502 = vsub.s32 %v1499, %v1501
    %v1503 = vrot.slane %v1496, %v1502
    %s1506 = scalar_lea.vmem [#allocation2], 1
    %1507 = vst.msk [vmem:[%s1506] ss:$8 sm:$0x3] %vm1317, %v1488
    %1508 = vst.msk [vmem:[%s1506] ss:$8 sm:$0x0] %vm1317, %v1488
    %s1509 = scalar_lea.vmem [#allocation2], 17
    %1510 = vst.msk [vmem:[%s1509] ss:$8 sm:$0x3] %vm1317, %v1503
    %1511 = vst.msk [vmem:[%s1509] ss:$8 sm:$0x0] %vm1317, %v1503
    %s1512 = scalar_lea.vmem %s2, 8
    %v1513 = vld [vmem:[%s1512] sm:$0xf]
    %1515 = vset.pattern.permute.xlu0 0
    %1516 = vperm.xlu0 %1515, %v1513
    %v1517 = vpop.permute.xlu0 %1516
    %v1518 = vlaneseq
    %v1519 = vshrl.u32 %v1518, 7
    %v1520 = vsub.s32 0, %v1519
    %v1521 = vrot.slane %v1517, %v1520
    %v1522 = vlaneseq
    %v1523 = vshrl.u32 %v1522, 7
    %v1524 = vsub.s32 1, %v1523
    %v1525 = vrot.slane %v1517, %v1524
    %v1526 = vlaneseq
    %v1527 = vshrl.u32 %v1526, 7
    %v1528 = vsub.s32 2, %v1527
    %v1529 = vrot.slane %v1517, %v1528
    %v1530 = vlaneseq
    %v1531 = vshrl.u32 %v1530, 7
    %v1532 = vsub.s32 3, %v1531
    %v1533 = vrot.slane %v1517, %v1532
    %v1538 = vmul.f32 %v1123, %v1521
    %v1539 = vmul.f32 %v1124, %v1525
    %v1540 = vmul.f32 %v1125, %v1529
    %v1541 = vmul.f32 %v1126, %v1533
    %v1542 = vmul.f32 %v1127, %v1521
    %v1543 = vmul.f32 %v1128, %v1525
    %v1544 = vmul.f32 %v1129, %v1529
    %v1545 = vmul.f32 %v1130, %v1533
    %v1554 = vcombine.low %v1538, %v1539
    %v1555 = vcombine.low %v1540, %v1541
    %v1557 = vunpack.c.l.s4 1966171168
    %v1558 = vunpack.c.0.s8 %v1557
    %v1559 = vlaneseq
    %v1560 = vshrl.u32 %v1559, 7
    %v1561 = vsub.s32 %v1558, %v1560
    %v1562 = vrot.slane %v1554, %v1561
    %v1564 = vunpack.c.l.s4 1966171168
    %v1565 = vunpack.c.0.s8 %v1564
    %v1566 = vlaneseq
    %v1567 = vshrl.u32 %v1566, 7
    %v1568 = vsub.s32 %v1565, %v1567
    %v1569 = vrot.slane %v1555, %v1568
    %v1570 = vcombine.low %v1562, %v1569
    %v1571 = vcombine.high %v1562, %v1569
    %v1573 = vunpack.c.l.s4 1966171168
    %v1574 = vunpack.c.0.s8 %v1573
    %v1575 = vlaneseq
    %v1576 = vshrl.u32 %v1575, 7
    %v1577 = vsub.s32 %v1574, %v1576
    %v1578 = vrot.slane %v1570, %v1577
    %v1580 = vunpack.c.l.s4 1966171168
    %v1581 = vunpack.c.0.s8 %v1580
    %v1582 = vlaneseq
    %v1583 = vshrl.u32 %v1582, 7
    %v1584 = vsub.s32 %v1581, %v1583
    %v1585 = vrot.slane %v1571, %v1584
    %v1586 = vcombine.low %v1542, %v1543
    %v1587 = vcombine.low %v1544, %v1545
    %v1589 = vunpack.c.l.s4 1966171168
    %v1590 = vunpack.c.0.s8 %v1589
    %v1591 = vlaneseq
    %v1592 = vshrl.u32 %v1591, 7
    %v1593 = vsub.s32 %v1590, %v1592
    %v1594 = vrot.slane %v1586, %v1593
    %v1596 = vunpack.c.l.s4 1966171168
    %v1597 = vunpack.c.0.s8 %v1596
    %v1598 = vlaneseq
    %v1599 = vshrl.u32 %v1598, 7
    %v1600 = vsub.s32 %v1597, %v1599
    %v1601 = vrot.slane %v1587, %v1600
    %v1602 = vcombine.low %v1594, %v1601
    %v1603 = vcombine.high %v1594, %v1601
    %v1605 = vunpack.c.l.s4 1966171168
    %v1606 = vunpack.c.0.s8 %v1605
    %v1607 = vlaneseq
    %v1608 = vshrl.u32 %v1607, 7
    %v1609 = vsub.s32 %v1606, %v1608
    %v1610 = vrot.slane %v1602, %v1609
    %v1612 = vunpack.c.l.s4 1966171168
    %v1613 = vunpack.c.0.s8 %v1612
    %v1614 = vlaneseq
    %v1615 = vshrl.u32 %v1614, 7
    %v1616 = vsub.s32 %v1613, %v1615
    %v1617 = vrot.slane %v1603, %v1616
    %v1622 = vsel %vm1240, %v1578, 0.0
    %v1623 = vrot.slane %v1622, 4
    %v1624 = vadd.f32 %v1622, %v1623
    %v1625 = vrot.slane %v1624, 2
    %v1626 = vadd.f32 %v1624, %v1625
    %v1627 = vrot.slane %v1626, 1
    %v1628 = vadd.f32 %v1626, %v1627
    %v1629 = vsel %vm1240, %v1585, 0.0
    %v1630 = vrot.slane %v1629, 4
    %v1631 = vadd.f32 %v1629, %v1630
    %v1632 = vrot.slane %v1631, 2
    %v1633 = vadd.f32 %v1631, %v1632
    %v1634 = vrot.slane %v1633, 1
    %v1635 = vadd.f32 %v1633, %v1634
    %v1636 = vsel %vm1240, %v1610, 0.0
    %v1637 = vrot.slane %v1636, 4
    %v1638 = vadd.f32 %v1636, %v1637
    %v1639 = vrot.slane %v1638, 2
    %v1640 = vadd.f32 %v1638, %v1639
    %v1641 = vrot.slane %v1640, 1
    %v1642 = vadd.f32 %v1640, %v1641
    %v1643 = vsel %vm1240, %v1617, 0.0
    %v1644 = vrot.slane %v1643, 4
    %v1645 = vadd.f32 %v1643, %v1644
    %v1646 = vrot.slane %v1645, 2
    %v1647 = vadd.f32 %v1645, %v1646
    %v1648 = vrot.slane %v1647, 1
    %v1649 = vadd.f32 %v1647, %v1648
    %v1650 = vld [vmem:[%s3 + $0x2] sm:$0x1]
    %s1652 = vtos %v1650
    %v1653 = vstv %s1652
    %v1655 = vadd.f32 %v1628, %v1653
    %v1656 = vadd.f32 %v1635, %v1653
    %v1657 = vadd.f32 %v1642, %v1653
    %v1658 = vadd.f32 %v1649, %v1653
    %v1663 = vcombine.low %v1655, %v1656
    %v1665 = vunpack.c.l.s4 1966171168
    %v1666 = vunpack.c.0.s8 %v1665
    %v1667 = vlaneseq
    %v1668 = vshrl.u32 %v1667, 7
    %v1669 = vsub.s32 %v1666, %v1668
    %v1670 = vrot.slane %v1663, %v1669
    %v1672 = vunpack.c.l.s4 1966171168
    %v1673 = vunpack.c.0.s8 %v1672
    %v1674 = vlaneseq
    %v1675 = vshrl.u32 %v1674, 7
    %v1676 = vsub.s32 %v1673, %v1675
    %v1677 = vrot.slane %v1670, %v1676
    %v1678 = vcombine.low %v1657, %v1658
    %v1680 = vunpack.c.l.s4 1966171168
    %v1681 = vunpack.c.0.s8 %v1680
    %v1682 = vlaneseq
    %v1683 = vshrl.u32 %v1682, 7
    %v1684 = vsub.s32 %v1681, %v1683
    %v1685 = vrot.slane %v1678, %v1684
    %v1687 = vunpack.c.l.s4 1966171168
    %v1688 = vunpack.c.0.s8 %v1687
    %v1689 = vlaneseq
    %v1690 = vshrl.u32 %v1689, 7
    %v1691 = vsub.s32 %v1688, %v1690
    %v1692 = vrot.slane %v1685, %v1691
    %s1695 = scalar_lea.vmem [#allocation2], 2
    %1696 = vst.msk [vmem:[%s1695] ss:$8 sm:$0x3] %vm1317, %v1677
    %1697 = vst.msk [vmem:[%s1695] ss:$8 sm:$0x0] %vm1317, %v1677
    %s1698 = scalar_lea.vmem [#allocation2], 18
    %1699 = vst.msk [vmem:[%s1698] ss:$8 sm:$0x3] %vm1317, %v1692
    %1700 = vst.msk [vmem:[%s1698] ss:$8 sm:$0x0] %vm1317, %v1692
    %s1701 = scalar_lea.vmem %s2, 12
    %v1702 = vld [vmem:[%s1701] sm:$0xf]
    %1704 = vset.pattern.permute.xlu0 0
    %1705 = vperm.xlu0 %1704, %v1702
    %v1706 = vpop.permute.xlu0 %1705
    %v1707 = vlaneseq
    %v1708 = vshrl.u32 %v1707, 7
    %v1709 = vsub.s32 0, %v1708
    %v1710 = vrot.slane %v1706, %v1709
    %v1711 = vlaneseq
    %v1712 = vshrl.u32 %v1711, 7
    %v1713 = vsub.s32 1, %v1712
    %v1714 = vrot.slane %v1706, %v1713
    %v1715 = vlaneseq
    %v1716 = vshrl.u32 %v1715, 7
    %v1717 = vsub.s32 2, %v1716
    %v1718 = vrot.slane %v1706, %v1717
    %v1719 = vlaneseq
    %v1720 = vshrl.u32 %v1719, 7
    %v1721 = vsub.s32 3, %v1720
    %v1722 = vrot.slane %v1706, %v1721
    %v1727 = vmul.f32 %v1123, %v1710
    %v1728 = vmul.f32 %v1124, %v1714
    %v1729 = vmul.f32 %v1125, %v1718
    %v1730 = vmul.f32 %v1126, %v1722
    %v1731 = vmul.f32 %v1127, %v1710
    %v1732 = vmul.f32 %v1128, %v1714
    %v1733 = vmul.f32 %v1129, %v1718
    %v1734 = vmul.f32 %v1130, %v1722
    %v1743 = vcombine.low %v1727, %v1728
    %v1744 = vcombine.low %v1729, %v1730
    %v1746 = vunpack.c.l.s4 1966171168
    %v1747 = vunpack.c.0.s8 %v1746
    %v1748 = vlaneseq
    %v1749 = vshrl.u32 %v1748, 7
    %v1750 = vsub.s32 %v1747, %v1749
    %v1751 = vrot.slane %v1743, %v1750
    %v1753 = vunpack.c.l.s4 1966171168
    %v1754 = vunpack.c.0.s8 %v1753
    %v1755 = vlaneseq
    %v1756 = vshrl.u32 %v1755, 7
    %v1757 = vsub.s32 %v1754, %v1756
    %v1758 = vrot.slane %v1744, %v1757
    %v1759 = vcombine.low %v1751, %v1758
    %v1760 = vcombine.high %v1751, %v1758
    %v1762 = vunpack.c.l.s4 1966171168
    %v1763 = vunpack.c.0.s8 %v1762
    %v1764 = vlaneseq
    %v1765 = vshrl.u32 %v1764, 7
    %v1766 = vsub.s32 %v1763, %v1765
    %v1767 = vrot.slane %v1759, %v1766
    %v1769 = vunpack.c.l.s4 1966171168
    %v1770 = vunpack.c.0.s8 %v1769
    %v1771 = vlaneseq
    %v1772 = vshrl.u32 %v1771, 7
    %v1773 = vsub.s32 %v1770, %v1772
    %v1774 = vrot.slane %v1760, %v1773
    %v1775 = vcombine.low %v1731, %v1732
    %v1776 = vcombine.low %v1733, %v1734
    %v1778 = vunpack.c.l.s4 1966171168
    %v1779 = vunpack.c.0.s8 %v1778
    %v1780 = vlaneseq
    %v1781 = vshrl.u32 %v1780, 7
    %v1782 = vsub.s32 %v1779, %v1781
    %v1783 = vrot.slane %v1775, %v1782
    %v1785 = vunpack.c.l.s4 1966171168
    %v1786 = vunpack.c.0.s8 %v1785
    %v1787 = vlaneseq
    %v1788 = vshrl.u32 %v1787, 7
    %v1789 = vsub.s32 %v1786, %v1788
    %v1790 = vrot.slane %v1776, %v1789
    %v1791 = vcombine.low %v1783, %v1790
    %v1792 = vcombine.high %v1783, %v1790
    %v1794 = vunpack.c.l.s4 1966171168
    %v1795 = vunpack.c.0.s8 %v1794
    %v1796 = vlaneseq
    %v1797 = vshrl.u32 %v1796, 7
    %v1798 = vsub.s32 %v1795, %v1797
    %v1799 = vrot.slane %v1791, %v1798
    %v1801 = vunpack.c.l.s4 1966171168
    %v1802 = vunpack.c.0.s8 %v1801
    %v1803 = vlaneseq
    %v1804 = vshrl.u32 %v1803, 7
    %v1805 = vsub.s32 %v1802, %v1804
    %v1806 = vrot.slane %v1792, %v1805
    %v1811 = vsel %vm1240, %v1767, 0.0
    %v1812 = vrot.slane %v1811, 4
    %v1813 = vadd.f32 %v1811, %v1812
    %v1814 = vrot.slane %v1813, 2
    %v1815 = vadd.f32 %v1813, %v1814
    %v1816 = vrot.slane %v1815, 1
    %v1817 = vadd.f32 %v1815, %v1816
    %v1818 = vsel %vm1240, %v1774, 0.0
    %v1819 = vrot.slane %v1818, 4
    %v1820 = vadd.f32 %v1818, %v1819
    %v1821 = vrot.slane %v1820, 2
    %v1822 = vadd.f32 %v1820, %v1821
    %v1823 = vrot.slane %v1822, 1
    %v1824 = vadd.f32 %v1822, %v1823
    %v1825 = vsel %vm1240, %v1799, 0.0
    %v1826 = vrot.slane %v1825, 4
    %v1827 = vadd.f32 %v1825, %v1826
    %v1828 = vrot.slane %v1827, 2
    %v1829 = vadd.f32 %v1827, %v1828
    %v1830 = vrot.slane %v1829, 1
    %v1831 = vadd.f32 %v1829, %v1830
    %v1832 = vsel %vm1240, %v1806, 0.0
    %v1833 = vrot.slane %v1832, 4
    %v1834 = vadd.f32 %v1832, %v1833
    %v1835 = vrot.slane %v1834, 2
    %v1836 = vadd.f32 %v1834, %v1835
    %v1837 = vrot.slane %v1836, 1
    %v1838 = vadd.f32 %v1836, %v1837
    %v1839 = vld [vmem:[%s3 + $0x3] sm:$0x1]
    %s1841 = vtos %v1839
    %v1842 = vstv %s1841
    %v1844 = vadd.f32 %v1817, %v1842
    %v1845 = vadd.f32 %v1824, %v1842
    %v1846 = vadd.f32 %v1831, %v1842
    %v1847 = vadd.f32 %v1838, %v1842
    %v1852 = vcombine.low %v1844, %v1845
    %v1854 = vunpack.c.l.s4 1966171168
    %v1855 = vunpack.c.0.s8 %v1854
    %v1856 = vlaneseq
    %v1857 = vshrl.u32 %v1856, 7
    %v1858 = vsub.s32 %v1855, %v1857
    %v1859 = vrot.slane %v1852, %v1858
    %v1861 = vunpack.c.l.s4 1966171168
    %v1862 = vunpack.c.0.s8 %v1861
    %v1863 = vlaneseq
    %v1864 = vshrl.u32 %v1863, 7
    %v1865 = vsub.s32 %v1862, %v1864
    %v1866 = vrot.slane %v1859, %v1865
    %v1867 = vcombine.low %v1846, %v1847
    %v1869 = vunpack.c.l.s4 1966171168
    %v1870 = vunpack.c.0.s8 %v1869
    %v1871 = vlaneseq
    %v1872 = vshrl.u32 %v1871, 7
    %v1873 = vsub.s32 %v1870, %v1872
    %v1874 = vrot.slane %v1867, %v1873
    %v1876 = vunpack.c.l.s4 1966171168
    %v1877 = vunpack.c.0.s8 %v1876
    %v1878 = vlaneseq
    %v1879 = vshrl.u32 %v1878, 7
    %v1880 = vsub.s32 %v1877, %v1879
    %v1881 = vrot.slane %v1874, %v1880
    %s1884 = scalar_lea.vmem [#allocation2], 3
    %1885 = vst.msk [vmem:[%s1884] ss:$8 sm:$0x3] %vm1317, %v1866
    %1886 = vst.msk [vmem:[%s1884] ss:$8 sm:$0x0] %vm1317, %v1866
    %s1887 = scalar_lea.vmem [#allocation2], 19
    %1888 = vst.msk [vmem:[%s1887] ss:$8 sm:$0x3] %vm1317, %v1881
    %1889 = vst.msk [vmem:[%s1887] ss:$8 sm:$0x0] %vm1317, %v1881
    %s1890 = scalar_lea.vmem %s2, 16
    %v1891 = vld [vmem:[%s1890] sm:$0xf]
    %1893 = vset.pattern.permute.xlu0 0
    %1894 = vperm.xlu0 %1893, %v1891
    %v1895 = vpop.permute.xlu0 %1894
    %v1896 = vlaneseq
    %v1897 = vshrl.u32 %v1896, 7
    %v1898 = vsub.s32 0, %v1897
    %v1899 = vrot.slane %v1895, %v1898
    %v1900 = vlaneseq
    %v1901 = vshrl.u32 %v1900, 7
    %v1902 = vsub.s32 1, %v1901
    %v1903 = vrot.slane %v1895, %v1902
    %v1904 = vlaneseq
    %v1905 = vshrl.u32 %v1904, 7
    %v1906 = vsub.s32 2, %v1905
    %v1907 = vrot.slane %v1895, %v1906
    %v1908 = vlaneseq
    %v1909 = vshrl.u32 %v1908, 7
    %v1910 = vsub.s32 3, %v1909
    %v1911 = vrot.slane %v1895, %v1910
    %v1916 = vmul.f32 %v1123, %v1899
    %v1917 = vmul.f32 %v1124, %v1903
    %v1918 = vmul.f32 %v1125, %v1907
    %v1919 = vmul.f32 %v1126, %v1911
    %v1920 = vmul.f32 %v1127, %v1899
    %v1921 = vmul.f32 %v1128, %v1903
    %v1922 = vmul.f32 %v1129, %v1907
    %v1923 = vmul.f32 %v1130, %v1911
    %v1932 = vcombine.low %v1916, %v1917
    %v1933 = vcombine.low %v1918, %v1919
    %v1935 = vunpack.c.l.s4 1966171168
    %v1936 = vunpack.c.0.s8 %v1935
    %v1937 = vlaneseq
    %v1938 = vshrl.u32 %v1937, 7
    %v1939 = vsub.s32 %v1936, %v1938
    %v1940 = vrot.slane %v1932, %v1939
    %v1942 = vunpack.c.l.s4 1966171168
    %v1943 = vunpack.c.0.s8 %v1942
    %v1944 = vlaneseq
    %v1945 = vshrl.u32 %v1944, 7
    %v1946 = vsub.s32 %v1943, %v1945
    %v1947 = vrot.slane %v1933, %v1946
    %v1948 = vcombine.low %v1940, %v1947
    %v1949 = vcombine.high %v1940, %v1947
    %v1951 = vunpack.c.l.s4 1966171168
    %v1952 = vunpack.c.0.s8 %v1951
    %v1953 = vlaneseq
    %v1954 = vshrl.u32 %v1953, 7
    %v1955 = vsub.s32 %v1952, %v1954
    %v1956 = vrot.slane %v1948, %v1955
    %v1958 = vunpack.c.l.s4 1966171168
    %v1959 = vunpack.c.0.s8 %v1958
    %v1960 = vlaneseq
    %v1961 = vshrl.u32 %v1960, 7
    %v1962 = vsub.s32 %v1959, %v1961
    %v1963 = vrot.slane %v1949, %v1962
    %v1964 = vcombine.low %v1920, %v1921
    %v1965 = vcombine.low %v1922, %v1923
    %v1967 = vunpack.c.l.s4 1966171168
    %v1968 = vunpack.c.0.s8 %v1967
    %v1969 = vlaneseq
    %v1970 = vshrl.u32 %v1969, 7
    %v1971 = vsub.s32 %v1968, %v1970
    %v1972 = vrot.slane %v1964, %v1971
    %v1974 = vunpack.c.l.s4 1966171168
    %v1975 = vunpack.c.0.s8 %v1974
    %v1976 = vlaneseq
    %v1977 = vshrl.u32 %v1976, 7
    %v1978 = vsub.s32 %v1975, %v1977
    %v1979 = vrot.slane %v1965, %v1978
    %v1980 = vcombine.low %v1972, %v1979
    %v1981 = vcombine.high %v1972, %v1979
    %v1983 = vunpack.c.l.s4 1966171168
    %v1984 = vunpack.c.0.s8 %v1983
    %v1985 = vlaneseq
    %v1986 = vshrl.u32 %v1985, 7
    %v1987 = vsub.s32 %v1984, %v1986
    %v1988 = vrot.slane %v1980, %v1987
    %v1990 = vunpack.c.l.s4 1966171168
    %v1991 = vunpack.c.0.s8 %v1990
    %v1992 = vlaneseq
    %v1993 = vshrl.u32 %v1992, 7
    %v1994 = vsub.s32 %v1991, %v1993
    %v1995 = vrot.slane %v1981, %v1994
    %v2000 = vsel %vm1240, %v1956, 0.0
    %v2001 = vrot.slane %v2000, 4
    %v2002 = vadd.f32 %v2000, %v2001
    %v2003 = vrot.slane %v2002, 2
    %v2004 = vadd.f32 %v2002, %v2003
    %v2005 = vrot.slane %v2004, 1
    %v2006 = vadd.f32 %v2004, %v2005
    %v2007 = vsel %vm1240, %v1963, 0.0
    %v2008 = vrot.slane %v2007, 4
    %v2009 = vadd.f32 %v2007, %v2008
    %v2010 = vrot.slane %v2009, 2
    %v2011 = vadd.f32 %v2009, %v2010
    %v2012 = vrot.slane %v2011, 1
    %v2013 = vadd.f32 %v2011, %v2012
    %v2014 = vsel %vm1240, %v1988, 0.0
    %v2015 = vrot.slane %v2014, 4
    %v2016 = vadd.f32 %v2014, %v2015
    %v2017 = vrot.slane %v2016, 2
    %v2018 = vadd.f32 %v2016, %v2017
    %v2019 = vrot.slane %v2018, 1
    %v2020 = vadd.f32 %v2018, %v2019
    %v2021 = vsel %vm1240, %v1995, 0.0
    %v2022 = vrot.slane %v2021, 4
    %v2023 = vadd.f32 %v2021, %v2022
    %v2024 = vrot.slane %v2023, 2
    %v2025 = vadd.f32 %v2023, %v2024
    %v2026 = vrot.slane %v2025, 1
    %v2027 = vadd.f32 %v2025, %v2026
    %v2028 = vld [vmem:[%s3 + $0x4] sm:$0x1]
    %s2030 = vtos %v2028
    %v2031 = vstv %s2030
    %v2033 = vadd.f32 %v2006, %v2031
    %v2034 = vadd.f32 %v2013, %v2031
    %v2035 = vadd.f32 %v2020, %v2031
    %v2036 = vadd.f32 %v2027, %v2031
    %v2041 = vcombine.low %v2033, %v2034
    %v2043 = vunpack.c.l.s4 1966171168
    %v2044 = vunpack.c.0.s8 %v2043
    %v2045 = vlaneseq
    %v2046 = vshrl.u32 %v2045, 7
    %v2047 = vsub.s32 %v2044, %v2046
    %v2048 = vrot.slane %v2041, %v2047
    %v2050 = vunpack.c.l.s4 1966171168
    %v2051 = vunpack.c.0.s8 %v2050
    %v2052 = vlaneseq
    %v2053 = vshrl.u32 %v2052, 7
    %v2054 = vsub.s32 %v2051, %v2053
    %v2055 = vrot.slane %v2048, %v2054
    %v2056 = vcombine.low %v2035, %v2036
    %v2058 = vunpack.c.l.s4 1966171168
    %v2059 = vunpack.c.0.s8 %v2058
    %v2060 = vlaneseq
    %v2061 = vshrl.u32 %v2060, 7
    %v2062 = vsub.s32 %v2059, %v2061
    %v2063 = vrot.slane %v2056, %v2062
    %v2065 = vunpack.c.l.s4 1966171168
    %v2066 = vunpack.c.0.s8 %v2065
    %v2067 = vlaneseq
    %v2068 = vshrl.u32 %v2067, 7
    %v2069 = vsub.s32 %v2066, %v2068
    %v2070 = vrot.slane %v2063, %v2069
    %s2073 = scalar_lea.vmem [#allocation2], 4
    %2074 = vst.msk [vmem:[%s2073] ss:$8 sm:$0x3] %vm1317, %v2055
    %2075 = vst.msk [vmem:[%s2073] ss:$8 sm:$0x0] %vm1317, %v2055
    %s2076 = scalar_lea.vmem [#allocation2], 20
    %2077 = vst.msk [vmem:[%s2076] ss:$8 sm:$0x3] %vm1317, %v2070
    %2078 = vst.msk [vmem:[%s2076] ss:$8 sm:$0x0] %vm1317, %v2070
    %s2079 = scalar_lea.vmem %s2, 20
    %v2080 = vld [vmem:[%s2079] sm:$0xf]
    %2082 = vset.pattern.permute.xlu0 0
    %2083 = vperm.xlu0 %2082, %v2080
    %v2084 = vpop.permute.xlu0 %2083
    %v2085 = vlaneseq
    %v2086 = vshrl.u32 %v2085, 7
    %v2087 = vsub.s32 0, %v2086
    %v2088 = vrot.slane %v2084, %v2087
    %v2089 = vlaneseq
    %v2090 = vshrl.u32 %v2089, 7
    %v2091 = vsub.s32 1, %v2090
    %v2092 = vrot.slane %v2084, %v2091
    %v2093 = vlaneseq
    %v2094 = vshrl.u32 %v2093, 7
    %v2095 = vsub.s32 2, %v2094
    %v2096 = vrot.slane %v2084, %v2095
    %v2097 = vlaneseq
    %v2098 = vshrl.u32 %v2097, 7
    %v2099 = vsub.s32 3, %v2098
    %v2100 = vrot.slane %v2084, %v2099
    %v2105 = vmul.f32 %v1123, %v2088
    %v2106 = vmul.f32 %v1124, %v2092
    %v2107 = vmul.f32 %v1125, %v2096
    %v2108 = vmul.f32 %v1126, %v2100
    %v2109 = vmul.f32 %v1127, %v2088
    %v2110 = vmul.f32 %v1128, %v2092
    %v2111 = vmul.f32 %v1129, %v2096
    %v2112 = vmul.f32 %v1130, %v2100
    %v2121 = vcombine.low %v2105, %v2106
    %v2122 = vcombine.low %v2107, %v2108
    %v2124 = vunpack.c.l.s4 1966171168
    %v2125 = vunpack.c.0.s8 %v2124
    %v2126 = vlaneseq
    %v2127 = vshrl.u32 %v2126, 7
    %v2128 = vsub.s32 %v2125, %v2127
    %v2129 = vrot.slane %v2121, %v2128
    %v2131 = vunpack.c.l.s4 1966171168
    %v2132 = vunpack.c.0.s8 %v2131
    %v2133 = vlaneseq
    %v2134 = vshrl.u32 %v2133, 7
    %v2135 = vsub.s32 %v2132, %v2134
    %v2136 = vrot.slane %v2122, %v2135
    %v2137 = vcombine.low %v2129, %v2136
    %v2138 = vcombine.high %v2129, %v2136
    %v2140 = vunpack.c.l.s4 1966171168
    %v2141 = vunpack.c.0.s8 %v2140
    %v2142 = vlaneseq
    %v2143 = vshrl.u32 %v2142, 7
    %v2144 = vsub.s32 %v2141, %v2143
    %v2145 = vrot.slane %v2137, %v2144
    %v2147 = vunpack.c.l.s4 1966171168
    %v2148 = vunpack.c.0.s8 %v2147
    %v2149 = vlaneseq
    %v2150 = vshrl.u32 %v2149, 7
    %v2151 = vsub.s32 %v2148, %v2150
    %v2152 = vrot.slane %v2138, %v2151
    %v2153 = vcombine.low %v2109, %v2110
    %v2154 = vcombine.low %v2111, %v2112
    %v2156 = vunpack.c.l.s4 1966171168
    %v2157 = vunpack.c.0.s8 %v2156
    %v2158 = vlaneseq
    %v2159 = vshrl.u32 %v2158, 7
    %v2160 = vsub.s32 %v2157, %v2159
    %v2161 = vrot.slane %v2153, %v2160
    %v2163 = vunpack.c.l.s4 1966171168
    %v2164 = vunpack.c.0.s8 %v2163
    %v2165 = vlaneseq
    %v2166 = vshrl.u32 %v2165, 7
    %v2167 = vsub.s32 %v2164, %v2166
    %v2168 = vrot.slane %v2154, %v2167
    %v2169 = vcombine.low %v2161, %v2168
    %v2170 = vcombine.high %v2161, %v2168
    %v2172 = vunpack.c.l.s4 1966171168
    %v2173 = vunpack.c.0.s8 %v2172
    %v2174 = vlaneseq
    %v2175 = vshrl.u32 %v2174, 7
    %v2176 = vsub.s32 %v2173, %v2175
    %v2177 = vrot.slane %v2169, %v2176
    %v2179 = vunpack.c.l.s4 1966171168
    %v2180 = vunpack.c.0.s8 %v2179
    %v2181 = vlaneseq
    %v2182 = vshrl.u32 %v2181, 7
    %v2183 = vsub.s32 %v2180, %v2182
    %v2184 = vrot.slane %v2170, %v2183
    %v2189 = vsel %vm1240, %v2145, 0.0
    %v2190 = vrot.slane %v2189, 4
    %v2191 = vadd.f32 %v2189, %v2190
    %v2192 = vrot.slane %v2191, 2
    %v2193 = vadd.f32 %v2191, %v2192
    %v2194 = vrot.slane %v2193, 1
    %v2195 = vadd.f32 %v2193, %v2194
    %v2196 = vsel %vm1240, %v2152, 0.0
    %v2197 = vrot.slane %v2196, 4
    %v2198 = vadd.f32 %v2196, %v2197
    %v2199 = vrot.slane %v2198, 2
    %v2200 = vadd.f32 %v2198, %v2199
    %v2201 = vrot.slane %v2200, 1
    %v2202 = vadd.f32 %v2200, %v2201
    %v2203 = vsel %vm1240, %v2177, 0.0
    %v2204 = vrot.slane %v2203, 4
    %v2205 = vadd.f32 %v2203, %v2204
    %v2206 = vrot.slane %v2205, 2
    %v2207 = vadd.f32 %v2205, %v2206
    %v2208 = vrot.slane %v2207, 1
    %v2209 = vadd.f32 %v2207, %v2208
    %v2210 = vsel %vm1240, %v2184, 0.0
    %v2211 = vrot.slane %v2210, 4
    %v2212 = vadd.f32 %v2210, %v2211
    %v2213 = vrot.slane %v2212, 2
    %v2214 = vadd.f32 %v2212, %v2213
    %v2215 = vrot.slane %v2214, 1
    %v2216 = vadd.f32 %v2214, %v2215
    %v2217 = vld [vmem:[%s3 + $0x5] sm:$0x1]
    %s2219 = vtos %v2217
    %v2220 = vstv %s2219
    %v2222 = vadd.f32 %v2195, %v2220
    %v2223 = vadd.f32 %v2202, %v2220
    %v2224 = vadd.f32 %v2209, %v2220
    %v2225 = vadd.f32 %v2216, %v2220
    %v2230 = vcombine.low %v2222, %v2223
    %v2232 = vunpack.c.l.s4 1966171168
    %v2233 = vunpack.c.0.s8 %v2232
    %v2234 = vlaneseq
    %v2235 = vshrl.u32 %v2234, 7
    %v2236 = vsub.s32 %v2233, %v2235
    %v2237 = vrot.slane %v2230, %v2236
    %v2239 = vunpack.c.l.s4 1966171168
    %v2240 = vunpack.c.0.s8 %v2239
    %v2241 = vlaneseq
    %v2242 = vshrl.u32 %v2241, 7
    %v2243 = vsub.s32 %v2240, %v2242
    %v2244 = vrot.slane %v2237, %v2243
    %v2245 = vcombine.low %v2224, %v2225
    %v2247 = vunpack.c.l.s4 1966171168
    %v2248 = vunpack.c.0.s8 %v2247
    %v2249 = vlaneseq
    %v2250 = vshrl.u32 %v2249, 7
    %v2251 = vsub.s32 %v2248, %v2250
    %v2252 = vrot.slane %v2245, %v2251
    %v2254 = vunpack.c.l.s4 1966171168
    %v2255 = vunpack.c.0.s8 %v2254
    %v2256 = vlaneseq
    %v2257 = vshrl.u32 %v2256, 7
    %v2258 = vsub.s32 %v2255, %v2257
    %v2259 = vrot.slane %v2252, %v2258
    %s2262 = scalar_lea.vmem [#allocation2], 5
    %2263 = vst.msk [vmem:[%s2262] ss:$8 sm:$0x3] %vm1317, %v2244
    %2264 = vst.msk [vmem:[%s2262] ss:$8 sm:$0x0] %vm1317, %v2244
    %s2265 = scalar_lea.vmem [#allocation2], 21
    %2266 = vst.msk [vmem:[%s2265] ss:$8 sm:$0x3] %vm1317, %v2259
    %2267 = vst.msk [vmem:[%s2265] ss:$8 sm:$0x0] %vm1317, %v2259
    %s2268 = scalar_lea.vmem %s2, 24
    %v2269 = vld [vmem:[%s2268] sm:$0xf]
    %2271 = vset.pattern.permute.xlu0 0
    %2272 = vperm.xlu0 %2271, %v2269
    %v2273 = vpop.permute.xlu0 %2272
    %v2274 = vlaneseq
    %v2275 = vshrl.u32 %v2274, 7
    %v2276 = vsub.s32 0, %v2275
    %v2277 = vrot.slane %v2273, %v2276
    %v2278 = vlaneseq
    %v2279 = vshrl.u32 %v2278, 7
    %v2280 = vsub.s32 1, %v2279
    %v2281 = vrot.slane %v2273, %v2280
    %v2282 = vlaneseq
    %v2283 = vshrl.u32 %v2282, 7
    %v2284 = vsub.s32 2, %v2283
    %v2285 = vrot.slane %v2273, %v2284
    %v2286 = vlaneseq
    %v2287 = vshrl.u32 %v2286, 7
    %v2288 = vsub.s32 3, %v2287
    %v2289 = vrot.slane %v2273, %v2288
    %v2294 = vmul.f32 %v1123, %v2277
    %v2295 = vmul.f32 %v1124, %v2281
    %v2296 = vmul.f32 %v1125, %v2285
    %v2297 = vmul.f32 %v1126, %v2289
    %v2298 = vmul.f32 %v1127, %v2277
    %v2299 = vmul.f32 %v1128, %v2281
    %v2300 = vmul.f32 %v1129, %v2285
    %v2301 = vmul.f32 %v1130, %v2289
    %v2310 = vcombine.low %v2294, %v2295
    %v2311 = vcombine.low %v2296, %v2297
    %v2313 = vunpack.c.l.s4 1966171168
    %v2314 = vunpack.c.0.s8 %v2313
    %v2315 = vlaneseq
    %v2316 = vshrl.u32 %v2315, 7
    %v2317 = vsub.s32 %v2314, %v2316
    %v2318 = vrot.slane %v2310, %v2317
    %v2320 = vunpack.c.l.s4 1966171168
    %v2321 = vunpack.c.0.s8 %v2320
    %v2322 = vlaneseq
    %v2323 = vshrl.u32 %v2322, 7
    %v2324 = vsub.s32 %v2321, %v2323
    %v2325 = vrot.slane %v2311, %v2324
    %v2326 = vcombine.low %v2318, %v2325
    %v2327 = vcombine.high %v2318, %v2325
    %v2329 = vunpack.c.l.s4 1966171168
    %v2330 = vunpack.c.0.s8 %v2329
    %v2331 = vlaneseq
    %v2332 = vshrl.u32 %v2331, 7
    %v2333 = vsub.s32 %v2330, %v2332
    %v2334 = vrot.slane %v2326, %v2333
    %v2336 = vunpack.c.l.s4 1966171168
    %v2337 = vunpack.c.0.s8 %v2336
    %v2338 = vlaneseq
    %v2339 = vshrl.u32 %v2338, 7
    %v2340 = vsub.s32 %v2337, %v2339
    %v2341 = vrot.slane %v2327, %v2340
    %v2342 = vcombine.low %v2298, %v2299
    %v2343 = vcombine.low %v2300, %v2301
    %v2345 = vunpack.c.l.s4 1966171168
    %v2346 = vunpack.c.0.s8 %v2345
    %v2347 = vlaneseq
    %v2348 = vshrl.u32 %v2347, 7
    %v2349 = vsub.s32 %v2346, %v2348
    %v2350 = vrot.slane %v2342, %v2349
    %v2352 = vunpack.c.l.s4 1966171168
    %v2353 = vunpack.c.0.s8 %v2352
    %v2354 = vlaneseq
    %v2355 = vshrl.u32 %v2354, 7
    %v2356 = vsub.s32 %v2353, %v2355
    %v2357 = vrot.slane %v2343, %v2356
    %v2358 = vcombine.low %v2350, %v2357
    %v2359 = vcombine.high %v2350, %v2357
    %v2361 = vunpack.c.l.s4 1966171168
    %v2362 = vunpack.c.0.s8 %v2361
    %v2363 = vlaneseq
    %v2364 = vshrl.u32 %v2363, 7
    %v2365 = vsub.s32 %v2362, %v2364
    %v2366 = vrot.slane %v2358, %v2365
    %v2368 = vunpack.c.l.s4 1966171168
    %v2369 = vunpack.c.0.s8 %v2368
    %v2370 = vlaneseq
    %v2371 = vshrl.u32 %v2370, 7
    %v2372 = vsub.s32 %v2369, %v2371
    %v2373 = vrot.slane %v2359, %v2372
    %v2378 = vsel %vm1240, %v2334, 0.0
    %v2379 = vrot.slane %v2378, 4
    %v2380 = vadd.f32 %v2378, %v2379
    %v2381 = vrot.slane %v2380, 2
    %v2382 = vadd.f32 %v2380, %v2381
    %v2383 = vrot.slane %v2382, 1
    %v2384 = vadd.f32 %v2382, %v2383
    %v2385 = vsel %vm1240, %v2341, 0.0
    %v2386 = vrot.slane %v2385, 4
    %v2387 = vadd.f32 %v2385, %v2386
    %v2388 = vrot.slane %v2387, 2
    %v2389 = vadd.f32 %v2387, %v2388
    %v2390 = vrot.slane %v2389, 1
    %v2391 = vadd.f32 %v2389, %v2390
    %v2392 = vsel %vm1240, %v2366, 0.0
    %v2393 = vrot.slane %v2392, 4
    %v2394 = vadd.f32 %v2392, %v2393
    %v2395 = vrot.slane %v2394, 2
    %v2396 = vadd.f32 %v2394, %v2395
    %v2397 = vrot.slane %v2396, 1
    %v2398 = vadd.f32 %v2396, %v2397
    %v2399 = vsel %vm1240, %v2373, 0.0
    %v2400 = vrot.slane %v2399, 4
    %v2401 = vadd.f32 %v2399, %v2400
    %v2402 = vrot.slane %v2401, 2
    %v2403 = vadd.f32 %v2401, %v2402
    %v2404 = vrot.slane %v2403, 1
    %v2405 = vadd.f32 %v2403, %v2404
    %v2406 = vld [vmem:[%s3 + $0x6] sm:$0x1]
    %s2408 = vtos %v2406
    %v2409 = vstv %s2408
    %v2411 = vadd.f32 %v2384, %v2409
    %v2412 = vadd.f32 %v2391, %v2409
    %v2413 = vadd.f32 %v2398, %v2409
    %v2414 = vadd.f32 %v2405, %v2409
    %v2419 = vcombine.low %v2411, %v2412
    %v2421 = vunpack.c.l.s4 1966171168
    %v2422 = vunpack.c.0.s8 %v2421
    %v2423 = vlaneseq
    %v2424 = vshrl.u32 %v2423, 7
    %v2425 = vsub.s32 %v2422, %v2424
    %v2426 = vrot.slane %v2419, %v2425
    %v2428 = vunpack.c.l.s4 1966171168
    %v2429 = vunpack.c.0.s8 %v2428
    %v2430 = vlaneseq
    %v2431 = vshrl.u32 %v2430, 7
    %v2432 = vsub.s32 %v2429, %v2431
    %v2433 = vrot.slane %v2426, %v2432
    %v2434 = vcombine.low %v2413, %v2414
    %v2436 = vunpack.c.l.s4 1966171168
    %v2437 = vunpack.c.0.s8 %v2436
    %v2438 = vlaneseq
    %v2439 = vshrl.u32 %v2438, 7
    %v2440 = vsub.s32 %v2437, %v2439
    %v2441 = vrot.slane %v2434, %v2440
    %v2443 = vunpack.c.l.s4 1966171168
    %v2444 = vunpack.c.0.s8 %v2443
    %v2445 = vlaneseq
    %v2446 = vshrl.u32 %v2445, 7
    %v2447 = vsub.s32 %v2444, %v2446
    %v2448 = vrot.slane %v2441, %v2447
    %s2451 = scalar_lea.vmem [#allocation2], 6
    %2452 = vst.msk [vmem:[%s2451] ss:$8 sm:$0x3] %vm1317, %v2433
    %2453 = vst.msk [vmem:[%s2451] ss:$8 sm:$0x0] %vm1317, %v2433
    %s2454 = scalar_lea.vmem [#allocation2], 22
    %2455 = vst.msk [vmem:[%s2454] ss:$8 sm:$0x3] %vm1317, %v2448
    %2456 = vst.msk [vmem:[%s2454] ss:$8 sm:$0x0] %vm1317, %v2448
    %s2457 = scalar_lea.vmem %s2, 28
    %v2458 = vld [vmem:[%s2457] sm:$0xf]
    %2460 = vset.pattern.permute.xlu0 0
    %2461 = vperm.xlu0 %2460, %v2458
    %v2462 = vpop.permute.xlu0 %2461
    %v2463 = vlaneseq
    %v2464 = vshrl.u32 %v2463, 7
    %v2465 = vsub.s32 0, %v2464
    %v2466 = vrot.slane %v2462, %v2465
    %v2467 = vlaneseq
    %v2468 = vshrl.u32 %v2467, 7
    %v2469 = vsub.s32 1, %v2468
    %v2470 = vrot.slane %v2462, %v2469
    %v2471 = vlaneseq
    %v2472 = vshrl.u32 %v2471, 7
    %v2473 = vsub.s32 2, %v2472
    %v2474 = vrot.slane %v2462, %v2473
    %v2475 = vlaneseq
    %v2476 = vshrl.u32 %v2475, 7
    %v2477 = vsub.s32 3, %v2476
    %v2478 = vrot.slane %v2462, %v2477
    %v2483 = vmul.f32 %v1123, %v2466
    %v2484 = vmul.f32 %v1124, %v2470
    %v2485 = vmul.f32 %v1125, %v2474
    %v2486 = vmul.f32 %v1126, %v2478
    %v2487 = vmul.f32 %v1127, %v2466
    %v2488 = vmul.f32 %v1128, %v2470
    %v2489 = vmul.f32 %v1129, %v2474
    %v2490 = vmul.f32 %v1130, %v2478
    %v2499 = vcombine.low %v2483, %v2484
    %v2500 = vcombine.low %v2485, %v2486
    %v2502 = vunpack.c.l.s4 1966171168
    %v2503 = vunpack.c.0.s8 %v2502
    %v2504 = vlaneseq
    %v2505 = vshrl.u32 %v2504, 7
    %v2506 = vsub.s32 %v2503, %v2505
    %v2507 = vrot.slane %v2499, %v2506
    %v2509 = vunpack.c.l.s4 1966171168
    %v2510 = vunpack.c.0.s8 %v2509
    %v2511 = vlaneseq
    %v2512 = vshrl.u32 %v2511, 7
    %v2513 = vsub.s32 %v2510, %v2512
    %v2514 = vrot.slane %v2500, %v2513
    %v2515 = vcombine.low %v2507, %v2514
    %v2516 = vcombine.high %v2507, %v2514
    %v2518 = vunpack.c.l.s4 1966171168
    %v2519 = vunpack.c.0.s8 %v2518
    %v2520 = vlaneseq
    %v2521 = vshrl.u32 %v2520, 7
    %v2522 = vsub.s32 %v2519, %v2521
    %v2523 = vrot.slane %v2515, %v2522
    %v2525 = vunpack.c.l.s4 1966171168
    %v2526 = vunpack.c.0.s8 %v2525
    %v2527 = vlaneseq
    %v2528 = vshrl.u32 %v2527, 7
    %v2529 = vsub.s32 %v2526, %v2528
    %v2530 = vrot.slane %v2516, %v2529
    %v2531 = vcombine.low %v2487, %v2488
    %v2532 = vcombine.low %v2489, %v2490
    %v2534 = vunpack.c.l.s4 1966171168
    %v2535 = vunpack.c.0.s8 %v2534
    %v2536 = vlaneseq
    %v2537 = vshrl.u32 %v2536, 7
    %v2538 = vsub.s32 %v2535, %v2537
    %v2539 = vrot.slane %v2531, %v2538
    %v2541 = vunpack.c.l.s4 1966171168
    %v2542 = vunpack.c.0.s8 %v2541
    %v2543 = vlaneseq
    %v2544 = vshrl.u32 %v2543, 7
    %v2545 = vsub.s32 %v2542, %v2544
    %v2546 = vrot.slane %v2532, %v2545
    %v2547 = vcombine.low %v2539, %v2546
    %v2548 = vcombine.high %v2539, %v2546
    %v2550 = vunpack.c.l.s4 1966171168
    %v2551 = vunpack.c.0.s8 %v2550
    %v2552 = vlaneseq
    %v2553 = vshrl.u32 %v2552, 7
    %v2554 = vsub.s32 %v2551, %v2553
    %v2555 = vrot.slane %v2547, %v2554
    %v2557 = vunpack.c.l.s4 1966171168
    %v2558 = vunpack.c.0.s8 %v2557
    %v2559 = vlaneseq
    %v2560 = vshrl.u32 %v2559, 7
    %v2561 = vsub.s32 %v2558, %v2560
    %v2562 = vrot.slane %v2548, %v2561
    %v2567 = vsel %vm1240, %v2523, 0.0
    %v2568 = vrot.slane %v2567, 4
    %v2569 = vadd.f32 %v2567, %v2568
    %v2570 = vrot.slane %v2569, 2
    %v2571 = vadd.f32 %v2569, %v2570
    %v2572 = vrot.slane %v2571, 1
    %v2573 = vadd.f32 %v2571, %v2572
    %v2574 = vsel %vm1240, %v2530, 0.0
    %v2575 = vrot.slane %v2574, 4
    %v2576 = vadd.f32 %v2574, %v2575
    %v2577 = vrot.slane %v2576, 2
    %v2578 = vadd.f32 %v2576, %v2577
    %v2579 = vrot.slane %v2578, 1
    %v2580 = vadd.f32 %v2578, %v2579
    %v2581 = vsel %vm1240, %v2555, 0.0
    %v2582 = vrot.slane %v2581, 4
    %v2583 = vadd.f32 %v2581, %v2582
    %v2584 = vrot.slane %v2583, 2
    %v2585 = vadd.f32 %v2583, %v2584
    %v2586 = vrot.slane %v2585, 1
    %v2587 = vadd.f32 %v2585, %v2586
    %v2588 = vsel %vm1240, %v2562, 0.0
    %v2589 = vrot.slane %v2588, 4
    %v2590 = vadd.f32 %v2588, %v2589
    %v2591 = vrot.slane %v2590, 2
    %v2592 = vadd.f32 %v2590, %v2591
    %v2593 = vrot.slane %v2592, 1
    %v2594 = vadd.f32 %v2592, %v2593
    %v2595 = vld [vmem:[%s3 + $0x7] sm:$0x1]
    %s2597 = vtos %v2595
    %v2598 = vstv %s2597
    %v2600 = vadd.f32 %v2573, %v2598
    %v2601 = vadd.f32 %v2580, %v2598
    %v2602 = vadd.f32 %v2587, %v2598
    %v2603 = vadd.f32 %v2594, %v2598
    %v2608 = vcombine.low %v2600, %v2601
    %v2610 = vunpack.c.l.s4 1966171168
    %v2611 = vunpack.c.0.s8 %v2610
    %v2612 = vlaneseq
    %v2613 = vshrl.u32 %v2612, 7
    %v2614 = vsub.s32 %v2611, %v2613
    %v2615 = vrot.slane %v2608, %v2614
    %v2617 = vunpack.c.l.s4 1966171168
    %v2618 = vunpack.c.0.s8 %v2617
    %v2619 = vlaneseq
    %v2620 = vshrl.u32 %v2619, 7
    %v2621 = vsub.s32 %v2618, %v2620
    %v2622 = vrot.slane %v2615, %v2621
    %v2623 = vcombine.low %v2602, %v2603
    %v2625 = vunpack.c.l.s4 1966171168
    %v2626 = vunpack.c.0.s8 %v2625
    %v2627 = vlaneseq
    %v2628 = vshrl.u32 %v2627, 7
    %v2629 = vsub.s32 %v2626, %v2628
    %v2630 = vrot.slane %v2623, %v2629
    %v2632 = vunpack.c.l.s4 1966171168
    %v2633 = vunpack.c.0.s8 %v2632
    %v2634 = vlaneseq
    %v2635 = vshrl.u32 %v2634, 7
    %v2636 = vsub.s32 %v2633, %v2635
    %v2637 = vrot.slane %v2630, %v2636
    %s2640 = scalar_lea.vmem [#allocation2], 7
    %2641 = vst.msk [vmem:[%s2640] ss:$8 sm:$0x3] %vm1317, %v2622
    %2642 = vst.msk [vmem:[%s2640] ss:$8 sm:$0x0] %vm1317, %v2622
    %s2643 = scalar_lea.vmem [#allocation2], 23
    %2644 = vst.msk [vmem:[%s2643] ss:$8 sm:$0x3] %vm1317, %v2637
    %2645 = vst.msk [vmem:[%s2643] ss:$8 sm:$0x0] %vm1317, %v2637
    // Predicated region
    $region22: #{tpu_custom_call.1} parent=1 // pred_check
      _
    $region23: #{tpu_custom_call.1} parent=1 // pred_check_branch
      %2647 = sbr.rel (0) target = $region25
    $region24: #{tpu_custom_call.1} parent=1 // pred_region
      %s2649 = ssub.s32 512, 512
      %2650 = vsyncadd [#allocation3], %s2649
      %s2651 = sshll.u32 [#allocation2], 4
      %s2652 = int_to_ptr.vmem [resolvable:$true] %s2651
      %2657 = dma.vmem_to_hbm [thread:$0]  %s2652, 512, %s5, [#allocation3], 256, 256, 16
    $region25: #{tpu_custom_call.1} parent=1 // pred_fallthru
      _
    // Predicated region
    $region26: #{tpu_custom_call.1} parent=1 // pred_check
      _
    $region27: #{tpu_custom_call.1} parent=1 // pred_check_branch
      %2659 = sbr.rel (0) target = $region29
    $region28: #{tpu_custom_call.1} parent=1 // pred_region
      %2660 = dma.done [#allocation3], 512
    $region29: #{tpu_custom_call.1} parent=1 // pred_fallthru
      _
    %2661 = vsyncpa [#allocation3], 1

</llo_original>
